<compile_context>
chip_gen: v7x
topology: tpu7x:2x2x1
jax: 0.10.0
libtpu: 0.0.40
codegen_flags: <defaults>
</compile_context>

<pallas_src>
import functools

import jax
import jax.numpy as jnp
from jax.experimental import pallas as pl
from jax.experimental.pallas import tpu as pltpu

# ---------------- hyper-parameters (stand-in for `params`) ----------------
NUM_EMBEDDINGS = 50
TEXT_DIM = 16
SHORT_EMB_DIM = 8
D_IN = TEXT_DIM + SHORT_EMB_DIM          # LSTM input size
HIDDEN_DIM = 32                          # text_gru_hidden_dim
NUM_GRU_LAYERS = 1                       # 1 layer: hidden[-1] == layer-0 backward
NUM_SPEAKERS = 4
SPEAKER_EMB_DIM = 8
GENDER_EMB_DIM = 4
USE_SPEAKER = True
FC_HIDDEN_DIM = 16
FINAL_HIDDEN_DIM = 4                     # out_dims != 1 -> no final sigmoid
B = 2
S = 8


def _lstm_fc_kernel(x_ref, len_ref, wih_ref, whh_ref, b_ref,
                    spk_ref, w1h_ref, w1s_ref, b1_ref, out_ref):
    """Reverse (backward-direction) LSTM + fc1 + tanh.

    x_ref   : (S*B, D_in) time-major flattened inputs (row t*B + b).
    len_ref : (B, 1) int32 valid lengths.
    wih_ref : (D_in, 4H), whh_ref: (H, 4H), b_ref: (1, 4H)   [gate order i,f,g,o]
              -- the g-gate column block of all three is PRE-SCALED by 2 so that
                 a single sigmoid gives  g = 2*sigmoid(2x) - 1 = tanh(x).
    """
    B_ = len_ref.shape[0]
    S_ = x_ref.shape[0] // B_
    H = whh_ref.shape[0]

    # --- hoisted input projection: one MXU matmul for all timesteps ---
    gates_x = (jnp.dot(x_ref[...], wih_ref[...],
                       preferred_element_type=jnp.float32)
               + b_ref[...])                                  # (S*B, 4H)

    whh = whh_ref[...]
    lens = len_ref[...]                                       # (B, 1) int32

    h = jnp.zeros((B_, H), jnp.float32)
    c = jnp.zeros((B_, H), jnp.float32)

    # Fully unrolled reverse recurrence (S_ is static -> Python loop unrolls
    # at trace time; all slices below are static).
    for s in range(S_):
        t = S_ - 1 - s                                        # backward direction
        gates = gates_x[t * B_:(t + 1) * B_, :] + jnp.dot(
            h, whh, preferred_element_type=jnp.float32)       # (B, 4H)
        sig = jax.nn.sigmoid(gates)                           # ONE full-vreg EUP op
        i = sig[:, 0 * H:1 * H]
        f = sig[:, 1 * H:2 * H]
        g = 2.0 * sig[:, 2 * H:3 * H] - 1.0                   # == tanh (pre-scaled)
        o = sig[:, 3 * H:4 * H]
        c_new = f * c + i * g
        h_new = o * jnp.tanh(c_new)                           # second (and last) EUP op
        valid = lens > t                                      # pack_padded: skip pads
        h = jnp.where(valid, h_new, h)
        c = jnp.where(valid, c_new, c)

    # inputs = cat(encoded_text, speaker_embs); fc1; tanh.
    # Concat folded into two matmuls (avoids lane-dim concatenation).
    logits = (jnp.dot(h, w1h_ref[...], preferred_element_type=jnp.float32)
              + jnp.dot(spk_ref[...], w1s_ref[...],
                        preferred_element_type=jnp.float32)
              + b1_ref[...])
    out_ref[...] = jnp.tanh(logits)


# ---------------- parameter init (PyTorch-style) ----------------
def init_params(key):
    ks = jax.random.split(key, 10)
    emb = jax.random.normal(ks[0], (NUM_EMBEDDINGS, TEXT_DIM), jnp.float32)
    emb = emb.at[0].set(0.0)                                       # padding_idx=0
    short = jax.random.normal(ks[1], (NUM_EMBEDDINGS, SHORT_EMB_DIM), jnp.float32)
    spk = jax.random.normal(ks[2], (NUM_SPEAKERS, SPEAKER_EMB_DIM), jnp.float32)
    k = 1.0 / jnp.sqrt(HIDDEN_DIM)
    w_ih = jax.random.uniform(ks[3], (4 * HIDDEN_DIM, D_IN), jnp.float32, -k, k)
    w_hh = jax.random.uniform(ks[4], (4 * HIDDEN_DIM, HIDDEN_DIM), jnp.float32, -k, k)
    b_ih = jax.random.uniform(ks[5], (4 * HIDDEN_DIM,), jnp.float32, -k, k)
    b_hh = jax.random.uniform(ks[6], (4 * HIDDEN_DIM,), jnp.float32, -k, k)
    fc_in = HIDDEN_DIM + (SPEAKER_EMB_DIM if USE_SPEAKER else 0)
    kf = 1.0 / jnp.sqrt(fc_in)
    fc1_w = jax.random.uniform(ks[7], (FC_HIDDEN_DIM, fc_in), jnp.float32, -kf, kf)
    fc1_b = jax.random.uniform(ks[8], (FC_HIDDEN_DIM,), jnp.float32, -kf, kf)
    return dict(embedding=emb, short_embedding=short, speaker_embedding=spk,
                w_ih=w_ih, w_hh=w_hh, b_ih=b_ih, b_hh=b_hh,
                fc1_w=fc1_w, fc1_b=fc1_b)


def pack_params(params):
    """One-time weight preprocessing (runs once, NOT per forward call)."""
    H = HIDDEN_DIM
    w_ih_t = params["w_ih"].T.astype(jnp.float32)                  # (D_IN, 4H)
    w_hh_t = params["w_hh"].T.astype(jnp.float32)                  # (H, 4H)
    b = (params["b_ih"] + params["b_hh"]).reshape(1, 4 * H).astype(jnp.float32)
    # Pre-scale the g (cell-candidate) gate column block by 2 so the kernel can
    # evaluate one sigmoid over the whole (B, 4H) row and recover
    # tanh(x) = 2*sigmoid(2x) - 1 without a second per-step EUP dispatch.
    gscale = jnp.ones((1, 4 * H), jnp.float32).at[:, 2 * H:3 * H].set(2.0)
    w_ih_t = w_ih_t * gscale
    w_hh_t = w_hh_t * gscale
    b = b * gscale
    w1 = params["fc1_w"].T.astype(jnp.float32)                     # (H+SPK, FC)
    return dict(
        embedding=params["embedding"],
        short_embedding=params["short_embedding"],
        speaker_embedding=params["speaker_embedding"],
        w_ih_t=w_ih_t, w_hh_t=w_hh_t, b=b,
        w1h=w1[:H], w1s=w1[H:],
        b1=params["fc1_b"].reshape(1, FC_HIDDEN_DIM).astype(jnp.float32),
    )


# ---------------- jitted forward ----------------
@jax.jit
def text_only_rnn_forward(packed, text_input, speaker_input, length_input):
    # ----- embedding lookups (glue: gathers + max_norm renorm) -----
    looked = packed["embedding"][text_input]                       # (B, S, TEXT_DIM)
    norms = jnp.linalg.norm(looked, axis=-1, keepdims=True)
    scale = jnp.where(norms > 1.0, 1.0 / (norms + 1e-7), 1.0)      # max_norm=1.0
    embs = looked * scale
    short_embs = packed["short_embedding"][text_input]             # (B, S, SHORT)
    all_embs = jnp.concatenate([embs, short_embs], axis=2)         # (B, S, D_IN)

    spk_embs = packed["speaker_embedding"][speaker_input[:, 0]]    # (B, SPK)

    b_, s_, _ = all_embs.shape
    # Time-major, flattened: row t*B + b  -> one big input-projection matmul.
    x2d = jnp.transpose(all_embs, (1, 0, 2)).reshape(s_ * b_, D_IN).astype(jnp.float32)
    lens = length_input.reshape(b_, 1).astype(jnp.int32)           # (B, 1)

    vmem = pl.BlockSpec(memory_space=pltpu.MemorySpace.VMEM)
    out = pl.pallas_call(
        _lstm_fc_kernel,
        out_shape=jax.ShapeDtypeStruct((b_, FC_HIDDEN_DIM), jnp.float32),
        in_specs=[vmem] * 9,
        out_specs=vmem,
    )(x2d, lens, packed["w_ih_t"], packed["w_hh_t"], packed["b"],
      spk_embs.astype(jnp.float32), packed["w1h"], packed["w1s"], packed["b1"])

    if FINAL_HIDDEN_DIM == 1:          # out_dims == 1 branch of the module
        out = jax.nn.sigmoid(out)
    return out


# ---------------- pure-JAX reference (for a sanity check) ----------------
def _reference_forward(params, text_input, speaker_input, length_input):
    looked = params["embedding"][text_input]
    norms = jnp.linalg.norm(looked, axis=-1, keepdims=True)
    scale = jnp.where(norms > 1.0, 1.0 / (norms + 1e-7), 1.0)
    embs = looked * scale
    short = params["short_embedding"][text_input]
    x = jnp.concatenate([embs, short], axis=2)                     # (B, S, D_IN)
    spk = params["speaker_embedding"][speaker_input[:, 0]]
    H = HIDDEN_DIM
    bsz = x.shape[0]
    bias = params["b_ih"] + params["b_hh"]
    h = jnp.zeros((bsz, H), jnp.float32)
    c = jnp.zeros((bsz, H), jnp.float32)
    for t in range(S - 1, -1, -1):                                 # backward LSTM
        gates = x[:, t] @ params["w_ih"].T + h @ params["w_hh"].T + bias
        i = jax.nn.sigmoid(gates[:, 0 * H:1 * H])
        f = jax.nn.sigmoid(gates[:, 1 * H:2 * H])
        g = jnp.tanh(gates[:, 2 * H:3 * H])
        o = jax.nn.sigmoid(gates[:, 3 * H:4 * H])
        c_new = f * c + i * g
        h_new = o * jnp.tanh(c_new)
        valid = (length_input > t)[:, None]
        h = jnp.where(valid, h_new, h)
        c = jnp.where(valid, c_new, c)
    inputs = jnp.concatenate([h, spk], axis=1)
    return jnp.tanh(inputs @ params["fc1_w"].T + params["fc1_b"])


if __name__ == "__main__":
    key = jax.random.PRNGKey(0)
    pkey, tkey, skey = jax.random.split(key, 3)
    params = init_params(pkey)
    packed = pack_params(params)

    length_input = jnp.array([8, 5], dtype=jnp.int32)              # (B,)
    text_input = jax.random.randint(tkey, (B, S), 1, NUM_EMBEDDINGS, dtype=jnp.int32)
    pad_mask = jnp.arange(S)[None, :] < length_input[:, None]
    text_input = jnp.where(pad_mask, text_input, 0)                # pad with idx 0
    speaker_input = jax.random.randint(skey, (B, 1), 0, NUM_SPEAKERS, dtype=jnp.int32)

    out = text_only_rnn_forward(packed, text_input, speaker_input, length_input)
    out = jax.block_until_ready(out)
    assert out.shape == (B, FC_HIDDEN_DIM)

    ref = _reference_forward(params, text_input, speaker_input, length_input)
    assert jnp.allclose(out, ref, atol=5e-3, rtol=5e-3), "kernel vs reference mismatch"

    print("KERNEL_OK")
</pallas_src>

<mosaic_0001>
module attributes {stable_mosaic.version = 11 : i64} {
  func.func @_lstm_fc_kernel(%arg0: memref<16x24xf32, #tpu.memory_space<vmem>>, %arg1: memref<2x1xi32, #tpu.memory_space<vmem>>, %arg2: memref<24x128xf32, #tpu.memory_space<vmem>>, %arg3: memref<32x128xf32, #tpu.memory_space<vmem>>, %arg4: memref<1x128xf32, #tpu.memory_space<vmem>>, %arg5: memref<2x8xf32, #tpu.memory_space<vmem>>, %arg6: memref<32x16xf32, #tpu.memory_space<vmem>>, %arg7: memref<8x16xf32, #tpu.memory_space<vmem>>, %arg8: memref<1x16xf32, #tpu.memory_space<vmem>>, %arg9: memref<2x16xf32, #tpu.memory_space<vmem>>) attributes {dimension_semantics = [], scalar_prefetch = 0 : i64, scratch_operands = 0 : i64, tpu.core_type = #tpu.core_type<tc>} {
    %c0 = arith.constant 0 : index
    %c0_0 = arith.constant 0 : index
    %0 = vector.load %arg0[%c0, %c0_0] : memref<16x24xf32, #tpu.memory_space<vmem>>, vector<16x24xf32>
    %c0_1 = arith.constant 0 : index
    %c0_2 = arith.constant 0 : index
    %1 = vector.load %arg2[%c0_1, %c0_2] : memref<24x128xf32, #tpu.memory_space<vmem>>, vector<24x128xf32>
    %cst = arith.constant dense<0.000000e+00> : vector<16x128xf32>
    %2 = tpu.matmul %0, %1, %cst {dimension_numbers = #tpu.dot_dimension_numbers<[1], [0], [0], [1], [0, 0, 1, 1], [], []>} : vector<16x24xf32>, vector<24x128xf32>, vector<16x128xf32> -> vector<16x128xf32>
    %c0_3 = arith.constant 0 : index
    %c0_4 = arith.constant 0 : index
    %3 = vector.load %arg4[%c0_3, %c0_4] : memref<1x128xf32, #tpu.memory_space<vmem>>, vector<1x128xf32>
    %4 = vector.broadcast %3 : vector<1x128xf32> to vector<16x128xf32>
    %5 = arith.addf %2, %4 : vector<16x128xf32>
    %c0_5 = arith.constant 0 : index
    %c0_6 = arith.constant 0 : index
    %6 = vector.load %arg3[%c0_5, %c0_6] : memref<32x128xf32, #tpu.memory_space<vmem>>, vector<32x128xf32>
    %c0_7 = arith.constant 0 : index
    %c0_8 = arith.constant 0 : index
    %7 = vector.load %arg1[%c0_7, %c0_8] : memref<2x1xi32, #tpu.memory_space<vmem>>, vector<2x1xi32>
    %cst_9 = arith.constant 0.000000e+00 : f32
    %8 = vector.broadcast %cst_9 : f32 to vector<2x32xf32>
    %cst_10 = arith.constant 0.000000e+00 : f32
    %9 = vector.broadcast %cst_10 : f32 to vector<2x32xf32>
    %10 = vector.extract_strided_slice %5 {offsets = [14, 0], sizes = [2, 128], strides = [1, 1]} : vector<16x128xf32> to vector<2x128xf32>
    %cst_11 = arith.constant dense<0.000000e+00> : vector<2x128xf32>
    %11 = tpu.matmul %8, %6, %cst_11 {dimension_numbers = #tpu.dot_dimension_numbers<[1], [0], [0], [1], [0, 0, 1, 1], [], []>} : vector<2x32xf32>, vector<32x128xf32>, vector<2x128xf32> -> vector<2x128xf32>
    %12 = arith.addf %10, %11 : vector<2x128xf32>
    %13 = arith.negf %12 : vector<2x128xf32>
    %14 = math.exp %13 : vector<2x128xf32>
    %cst_12 = arith.constant 1.000000e+00 : f32
    %15 = vector.broadcast %cst_12 : f32 to vector<2x128xf32>
    %16 = arith.addf %15, %14 : vector<2x128xf32>
    %17 = arith.divf %15, %16 : vector<2x128xf32>
    %18 = vector.extract_strided_slice %17 {offsets = [0, 0], sizes = [2, 32], strides = [1, 1]} : vector<2x128xf32> to vector<2x32xf32>
    %19 = vector.extract_strided_slice %17 {offsets = [0, 32], sizes = [2, 32], strides = [1, 1]} : vector<2x128xf32> to vector<2x32xf32>
    %20 = vector.extract_strided_slice %17 {offsets = [0, 64], sizes = [2, 32], strides = [1, 1]} : vector<2x128xf32> to vector<2x32xf32>
    %cst_13 = arith.constant 2.000000e+00 : f32
    %21 = vector.broadcast %cst_13 : f32 to vector<2x32xf32>
    %22 = arith.mulf %21, %20 : vector<2x32xf32>
    %cst_14 = arith.constant 1.000000e+00 : f32
    %23 = vector.broadcast %cst_14 : f32 to vector<2x32xf32>
    %24 = arith.subf %22, %23 : vector<2x32xf32>
    %25 = vector.extract_strided_slice %17 {offsets = [0, 96], sizes = [2, 32], strides = [1, 1]} : vector<2x128xf32> to vector<2x32xf32>
    %26 = arith.mulf %19, %9 : vector<2x32xf32>
    %27 = arith.mulf %18, %24 : vector<2x32xf32>
    %28 = arith.addf %26, %27 : vector<2x32xf32>
    %29 = math.tanh %28 : vector<2x32xf32>
    %30 = arith.mulf %25, %29 : vector<2x32xf32>
    %c7_i32 = arith.constant 7 : i32
    %31 = vector.broadcast %c7_i32 : i32 to vector<2x1xi32>
    %32 = arith.cmpi sgt, %7, %31 : vector<2x1xi32>
    %33 = vector.shape_cast %32 : vector<2x1xi1> to vector<2x1xi1>
    %34 = vector.broadcast %33 : vector<2x1xi1> to vector<2x32xi1>
    %35 = arith.select %34, %30, %8 : vector<2x32xi1>, vector<2x32xf32>
    %36 = vector.shape_cast %32 : vector<2x1xi1> to vector<2x1xi1>
    %37 = vector.broadcast %36 : vector<2x1xi1> to vector<2x32xi1>
    %38 = arith.select %37, %28, %9 : vector<2x32xi1>, vector<2x32xf32>
    %39 = vector.extract_strided_slice %5 {offsets = [12, 0], sizes = [2, 128], strides = [1, 1]} : vector<16x128xf32> to vector<2x128xf32>
    %cst_15 = arith.constant dense<0.000000e+00> : vector<2x128xf32>
    %40 = tpu.matmul %35, %6, %cst_15 {dimension_numbers = #tpu.dot_dimension_numbers<[1], [0], [0], [1], [0, 0, 1, 1], [], []>} : vector<2x32xf32>, vector<32x128xf32>, vector<2x128xf32> -> vector<2x128xf32>
    %41 = arith.addf %39, %40 : vector<2x128xf32>
    %42 = arith.negf %41 : vector<2x128xf32>
    %43 = math.exp %42 : vector<2x128xf32>
    %cst_16 = arith.constant 1.000000e+00 : f32
    %44 = vector.broadcast %cst_16 : f32 to vector<2x128xf32>
    %45 = arith.addf %44, %43 : vector<2x128xf32>
    %46 = arith.divf %44, %45 : vector<2x128xf32>
    %47 = vector.extract_strided_slice %46 {offsets = [0, 0], sizes = [2, 32], strides = [1, 1]} : vector<2x128xf32> to vector<2x32xf32>
    %48 = vector.extract_strided_slice %46 {offsets = [0, 32], sizes = [2, 32], strides = [1, 1]} : vector<2x128xf32> to vector<2x32xf32>
    %49 = vector.extract_strided_slice %46 {offsets = [0, 64], sizes = [2, 32], strides = [1, 1]} : vector<2x128xf32> to vector<2x32xf32>
    %cst_17 = arith.constant 2.000000e+00 : f32
    %50 = vector.broadcast %cst_17 : f32 to vector<2x32xf32>
    %51 = arith.mulf %50, %49 : vector<2x32xf32>
    %cst_18 = arith.constant 1.000000e+00 : f32
    %52 = vector.broadcast %cst_18 : f32 to vector<2x32xf32>
    %53 = arith.subf %51, %52 : vector<2x32xf32>
    %54 = vector.extract_strided_slice %46 {offsets = [0, 96], sizes = [2, 32], strides = [1, 1]} : vector<2x128xf32> to vector<2x32xf32>
    %55 = arith.mulf %48, %38 : vector<2x32xf32>
    %56 = arith.mulf %47, %53 : vector<2x32xf32>
    %57 = arith.addf %55, %56 : vector<2x32xf32>
    %58 = math.tanh %57 : vector<2x32xf32>
    %59 = arith.mulf %54, %58 : vector<2x32xf32>
    %c6_i32 = arith.constant 6 : i32
    %60 = vector.broadcast %c6_i32 : i32 to vector<2x1xi32>
    %61 = arith.cmpi sgt, %7, %60 : vector<2x1xi32>
    %62 = vector.shape_cast %61 : vector<2x1xi1> to vector<2x1xi1>
    %63 = vector.broadcast %62 : vector<2x1xi1> to vector<2x32xi1>
    %64 = arith.select %63, %59, %35 : vector<2x32xi1>, vector<2x32xf32>
    %65 = vector.shape_cast %61 : vector<2x1xi1> to vector<2x1xi1>
    %66 = vector.broadcast %65 : vector<2x1xi1> to vector<2x32xi1>
    %67 = arith.select %66, %57, %38 : vector<2x32xi1>, vector<2x32xf32>
    %68 = vector.extract_strided_slice %5 {offsets = [10, 0], sizes = [2, 128], strides = [1, 1]} : vector<16x128xf32> to vector<2x128xf32>
    %cst_19 = arith.constant dense<0.000000e+00> : vector<2x128xf32>
    %69 = tpu.matmul %64, %6, %cst_19 {dimension_numbers = #tpu.dot_dimension_numbers<[1], [0], [0], [1], [0, 0, 1, 1], [], []>} : vector<2x32xf32>, vector<32x128xf32>, vector<2x128xf32> -> vector<2x128xf32>
    %70 = arith.addf %68, %69 : vector<2x128xf32>
    %71 = arith.negf %70 : vector<2x128xf32>
    %72 = math.exp %71 : vector<2x128xf32>
    %cst_20 = arith.constant 1.000000e+00 : f32
    %73 = vector.broadcast %cst_20 : f32 to vector<2x128xf32>
    %74 = arith.addf %73, %72 : vector<2x128xf32>
    %75 = arith.divf %73, %74 : vector<2x128xf32>
    %76 = vector.extract_strided_slice %75 {offsets = [0, 0], sizes = [2, 32], strides = [1, 1]} : vector<2x128xf32> to vector<2x32xf32>
    %77 = vector.extract_strided_slice %75 {offsets = [0, 32], sizes = [2, 32], strides = [1, 1]} : vector<2x128xf32> to vector<2x32xf32>
    %78 = vector.extract_strided_slice %75 {offsets = [0, 64], sizes = [2, 32], strides = [1, 1]} : vector<2x128xf32> to vector<2x32xf32>
    %cst_21 = arith.constant 2.000000e+00 : f32
    %79 = vector.broadcast %cst_21 : f32 to vector<2x32xf32>
    %80 = arith.mulf %79, %78 : vector<2x32xf32>
    %cst_22 = arith.constant 1.000000e+00 : f32
    %81 = vector.broadcast %cst_22 : f32 to vector<2x32xf32>
    %82 = arith.subf %80, %81 : vector<2x32xf32>
    %83 = vector.extract_strided_slice %75 {offsets = [0, 96], sizes = [2, 32], strides = [1, 1]} : vector<2x128xf32> to vector<2x32xf32>
    %84 = arith.mulf %77, %67 : vector<2x32xf32>
    %85 = arith.mulf %76, %82 : vector<2x32xf32>
    %86 = arith.addf %84, %85 : vector<2x32xf32>
    %87 = math.tanh %86 : vector<2x32xf32>
    %88 = arith.mulf %83, %87 : vector<2x32xf32>
    %c5_i32 = arith.constant 5 : i32
    %89 = vector.broadcast %c5_i32 : i32 to vector<2x1xi32>
    %90 = arith.cmpi sgt, %7, %89 : vector<2x1xi32>
    %91 = vector.shape_cast %90 : vector<2x1xi1> to vector<2x1xi1>
    %92 = vector.broadcast %91 : vector<2x1xi1> to vector<2x32xi1>
    %93 = arith.select %92, %88, %64 : vector<2x32xi1>, vector<2x32xf32>
    %94 = vector.shape_cast %90 : vector<2x1xi1> to vector<2x1xi1>
    %95 = vector.broadcast %94 : vector<2x1xi1> to vector<2x32xi1>
    %96 = arith.select %95, %86, %67 : vector<2x32xi1>, vector<2x32xf32>
    %97 = vector.extract_strided_slice %5 {offsets = [8, 0], sizes = [2, 128], strides = [1, 1]} : vector<16x128xf32> to vector<2x128xf32>
    %cst_23 = arith.constant dense<0.000000e+00> : vector<2x128xf32>
    %98 = tpu.matmul %93, %6, %cst_23 {dimension_numbers = #tpu.dot_dimension_numbers<[1], [0], [0], [1], [0, 0, 1, 1], [], []>} : vector<2x32xf32>, vector<32x128xf32>, vector<2x128xf32> -> vector<2x128xf32>
    %99 = arith.addf %97, %98 : vector<2x128xf32>
    %100 = arith.negf %99 : vector<2x128xf32>
    %101 = math.exp %100 : vector<2x128xf32>
    %cst_24 = arith.constant 1.000000e+00 : f32
    %102 = vector.broadcast %cst_24 : f32 to vector<2x128xf32>
    %103 = arith.addf %102, %101 : vector<2x128xf32>
    %104 = arith.divf %102, %103 : vector<2x128xf32>
    %105 = vector.extract_strided_slice %104 {offsets = [0, 0], sizes = [2, 32], strides = [1, 1]} : vector<2x128xf32> to vector<2x32xf32>
    %106 = vector.extract_strided_slice %104 {offsets = [0, 32], sizes = [2, 32], strides = [1, 1]} : vector<2x128xf32> to vector<2x32xf32>
    %107 = vector.extract_strided_slice %104 {offsets = [0, 64], sizes = [2, 32], strides = [1, 1]} : vector<2x128xf32> to vector<2x32xf32>
    %cst_25 = arith.constant 2.000000e+00 : f32
    %108 = vector.broadcast %cst_25 : f32 to vector<2x32xf32>
    %109 = arith.mulf %108, %107 : vector<2x32xf32>
    %cst_26 = arith.constant 1.000000e+00 : f32
    %110 = vector.broadcast %cst_26 : f32 to vector<2x32xf32>
    %111 = arith.subf %109, %110 : vector<2x32xf32>
    %112 = vector.extract_strided_slice %104 {offsets = [0, 96], sizes = [2, 32], strides = [1, 1]} : vector<2x128xf32> to vector<2x32xf32>
    %113 = arith.mulf %106, %96 : vector<2x32xf32>
    %114 = arith.mulf %105, %111 : vector<2x32xf32>
    %115 = arith.addf %113, %114 : vector<2x32xf32>
    %116 = math.tanh %115 : vector<2x32xf32>
    %117 = arith.mulf %112, %116 : vector<2x32xf32>
    %c4_i32 = arith.constant 4 : i32
    %118 = vector.broadcast %c4_i32 : i32 to vector<2x1xi32>
    %119 = arith.cmpi sgt, %7, %118 : vector<2x1xi32>
    %120 = vector.shape_cast %119 : vector<2x1xi1> to vector<2x1xi1>
    %121 = vector.broadcast %120 : vector<2x1xi1> to vector<2x32xi1>
    %122 = arith.select %121, %117, %93 : vector<2x32xi1>, vector<2x32xf32>
    %123 = vector.shape_cast %119 : vector<2x1xi1> to vector<2x1xi1>
    %124 = vector.broadcast %123 : vector<2x1xi1> to vector<2x32xi1>
    %125 = arith.select %124, %115, %96 : vector<2x32xi1>, vector<2x32xf32>
    %126 = vector.extract_strided_slice %5 {offsets = [6, 0], sizes = [2, 128], strides = [1, 1]} : vector<16x128xf32> to vector<2x128xf32>
    %cst_27 = arith.constant dense<0.000000e+00> : vector<2x128xf32>
    %127 = tpu.matmul %122, %6, %cst_27 {dimension_numbers = #tpu.dot_dimension_numbers<[1], [0], [0], [1], [0, 0, 1, 1], [], []>} : vector<2x32xf32>, vector<32x128xf32>, vector<2x128xf32> -> vector<2x128xf32>
    %128 = arith.addf %126, %127 : vector<2x128xf32>
    %129 = arith.negf %128 : vector<2x128xf32>
    %130 = math.exp %129 : vector<2x128xf32>
    %cst_28 = arith.constant 1.000000e+00 : f32
    %131 = vector.broadcast %cst_28 : f32 to vector<2x128xf32>
    %132 = arith.addf %131, %130 : vector<2x128xf32>
    %133 = arith.divf %131, %132 : vector<2x128xf32>
    %134 = vector.extract_strided_slice %133 {offsets = [0, 0], sizes = [2, 32], strides = [1, 1]} : vector<2x128xf32> to vector<2x32xf32>
    %135 = vector.extract_strided_slice %133 {offsets = [0, 32], sizes = [2, 32], strides = [1, 1]} : vector<2x128xf32> to vector<2x32xf32>
    %136 = vector.extract_strided_slice %133 {offsets = [0, 64], sizes = [2, 32], strides = [1, 1]} : vector<2x128xf32> to vector<2x32xf32>
    %cst_29 = arith.constant 2.000000e+00 : f32
    %137 = vector.broadcast %cst_29 : f32 to vector<2x32xf32>
    %138 = arith.mulf %137, %136 : vector<2x32xf32>
    %cst_30 = arith.constant 1.000000e+00 : f32
    %139 = vector.broadcast %cst_30 : f32 to vector<2x32xf32>
    %140 = arith.subf %138, %139 : vector<2x32xf32>
    %141 = vector.extract_strided_slice %133 {offsets = [0, 96], sizes = [2, 32], strides = [1, 1]} : vector<2x128xf32> to vector<2x32xf32>
    %142 = arith.mulf %135, %125 : vector<2x32xf32>
    %143 = arith.mulf %134, %140 : vector<2x32xf32>
    %144 = arith.addf %142, %143 : vector<2x32xf32>
    %145 = math.tanh %144 : vector<2x32xf32>
    %146 = arith.mulf %141, %145 : vector<2x32xf32>
    %c3_i32 = arith.constant 3 : i32
    %147 = vector.broadcast %c3_i32 : i32 to vector<2x1xi32>
    %148 = arith.cmpi sgt, %7, %147 : vector<2x1xi32>
    %149 = vector.shape_cast %148 : vector<2x1xi1> to vector<2x1xi1>
    %150 = vector.broadcast %149 : vector<2x1xi1> to vector<2x32xi1>
    %151 = arith.select %150, %146, %122 : vector<2x32xi1>, vector<2x32xf32>
    %152 = vector.shape_cast %148 : vector<2x1xi1> to vector<2x1xi1>
    %153 = vector.broadcast %152 : vector<2x1xi1> to vector<2x32xi1>
    %154 = arith.select %153, %144, %125 : vector<2x32xi1>, vector<2x32xf32>
    %155 = vector.extract_strided_slice %5 {offsets = [4, 0], sizes = [2, 128], strides = [1, 1]} : vector<16x128xf32> to vector<2x128xf32>
    %cst_31 = arith.constant dense<0.000000e+00> : vector<2x128xf32>
    %156 = tpu.matmul %151, %6, %cst_31 {dimension_numbers = #tpu.dot_dimension_numbers<[1], [0], [0], [1], [0, 0, 1, 1], [], []>} : vector<2x32xf32>, vector<32x128xf32>, vector<2x128xf32> -> vector<2x128xf32>
    %157 = arith.addf %155, %156 : vector<2x128xf32>
    %158 = arith.negf %157 : vector<2x128xf32>
    %159 = math.exp %158 : vector<2x128xf32>
    %cst_32 = arith.constant 1.000000e+00 : f32
    %160 = vector.broadcast %cst_32 : f32 to vector<2x128xf32>
    %161 = arith.addf %160, %159 : vector<2x128xf32>
    %162 = arith.divf %160, %161 : vector<2x128xf32>
    %163 = vector.extract_strided_slice %162 {offsets = [0, 0], sizes = [2, 32], strides = [1, 1]} : vector<2x128xf32> to vector<2x32xf32>
    %164 = vector.extract_strided_slice %162 {offsets = [0, 32], sizes = [2, 32], strides = [1, 1]} : vector<2x128xf32> to vector<2x32xf32>
    %165 = vector.extract_strided_slice %162 {offsets = [0, 64], sizes = [2, 32], strides = [1, 1]} : vector<2x128xf32> to vector<2x32xf32>
    %cst_33 = arith.constant 2.000000e+00 : f32
    %166 = vector.broadcast %cst_33 : f32 to vector<2x32xf32>
    %167 = arith.mulf %166, %165 : vector<2x32xf32>
    %cst_34 = arith.constant 1.000000e+00 : f32
    %168 = vector.broadcast %cst_34 : f32 to vector<2x32xf32>
    %169 = arith.subf %167, %168 : vector<2x32xf32>
    %170 = vector.extract_strided_slice %162 {offsets = [0, 96], sizes = [2, 32], strides = [1, 1]} : vector<2x128xf32> to vector<2x32xf32>
    %171 = arith.mulf %164, %154 : vector<2x32xf32>
    %172 = arith.mulf %163, %169 : vector<2x32xf32>
    %173 = arith.addf %171, %172 : vector<2x32xf32>
    %174 = math.tanh %173 : vector<2x32xf32>
    %175 = arith.mulf %170, %174 : vector<2x32xf32>
    %c2_i32 = arith.constant 2 : i32
    %176 = vector.broadcast %c2_i32 : i32 to vector<2x1xi32>
    %177 = arith.cmpi sgt, %7, %176 : vector<2x1xi32>
    %178 = vector.shape_cast %177 : vector<2x1xi1> to vector<2x1xi1>
    %179 = vector.broadcast %178 : vector<2x1xi1> to vector<2x32xi1>
    %180 = arith.select %179, %175, %151 : vector<2x32xi1>, vector<2x32xf32>
    %181 = vector.shape_cast %177 : vector<2x1xi1> to vector<2x1xi1>
    %182 = vector.broadcast %181 : vector<2x1xi1> to vector<2x32xi1>
    %183 = arith.select %182, %173, %154 : vector<2x32xi1>, vector<2x32xf32>
    %184 = vector.extract_strided_slice %5 {offsets = [2, 0], sizes = [2, 128], strides = [1, 1]} : vector<16x128xf32> to vector<2x128xf32>
    %cst_35 = arith.constant dense<0.000000e+00> : vector<2x128xf32>
    %185 = tpu.matmul %180, %6, %cst_35 {dimension_numbers = #tpu.dot_dimension_numbers<[1], [0], [0], [1], [0, 0, 1, 1], [], []>} : vector<2x32xf32>, vector<32x128xf32>, vector<2x128xf32> -> vector<2x128xf32>
    %186 = arith.addf %184, %185 : vector<2x128xf32>
    %187 = arith.negf %186 : vector<2x128xf32>
    %188 = math.exp %187 : vector<2x128xf32>
    %cst_36 = arith.constant 1.000000e+00 : f32
    %189 = vector.broadcast %cst_36 : f32 to vector<2x128xf32>
    %190 = arith.addf %189, %188 : vector<2x128xf32>
    %191 = arith.divf %189, %190 : vector<2x128xf32>
    %192 = vector.extract_strided_slice %191 {offsets = [0, 0], sizes = [2, 32], strides = [1, 1]} : vector<2x128xf32> to vector<2x32xf32>
    %193 = vector.extract_strided_slice %191 {offsets = [0, 32], sizes = [2, 32], strides = [1, 1]} : vector<2x128xf32> to vector<2x32xf32>
    %194 = vector.extract_strided_slice %191 {offsets = [0, 64], sizes = [2, 32], strides = [1, 1]} : vector<2x128xf32> to vector<2x32xf32>
    %cst_37 = arith.constant 2.000000e+00 : f32
    %195 = vector.broadcast %cst_37 : f32 to vector<2x32xf32>
    %196 = arith.mulf %195, %194 : vector<2x32xf32>
    %cst_38 = arith.constant 1.000000e+00 : f32
    %197 = vector.broadcast %cst_38 : f32 to vector<2x32xf32>
    %198 = arith.subf %196, %197 : vector<2x32xf32>
    %199 = vector.extract_strided_slice %191 {offsets = [0, 96], sizes = [2, 32], strides = [1, 1]} : vector<2x128xf32> to vector<2x32xf32>
    %200 = arith.mulf %193, %183 : vector<2x32xf32>
    %201 = arith.mulf %192, %198 : vector<2x32xf32>
    %202 = arith.addf %200, %201 : vector<2x32xf32>
    %203 = math.tanh %202 : vector<2x32xf32>
    %204 = arith.mulf %199, %203 : vector<2x32xf32>
    %c1_i32 = arith.constant 1 : i32
    %205 = vector.broadcast %c1_i32 : i32 to vector<2x1xi32>
    %206 = arith.cmpi sgt, %7, %205 : vector<2x1xi32>
    %207 = vector.shape_cast %206 : vector<2x1xi1> to vector<2x1xi1>
    %208 = vector.broadcast %207 : vector<2x1xi1> to vector<2x32xi1>
    %209 = arith.select %208, %204, %180 : vector<2x32xi1>, vector<2x32xf32>
    %210 = vector.shape_cast %206 : vector<2x1xi1> to vector<2x1xi1>
    %211 = vector.broadcast %210 : vector<2x1xi1> to vector<2x32xi1>
    %212 = arith.select %211, %202, %183 : vector<2x32xi1>, vector<2x32xf32>
    %213 = vector.extract_strided_slice %5 {offsets = [0, 0], sizes = [2, 128], strides = [1, 1]} : vector<16x128xf32> to vector<2x128xf32>
    %cst_39 = arith.constant dense<0.000000e+00> : vector<2x128xf32>
    %214 = tpu.matmul %209, %6, %cst_39 {dimension_numbers = #tpu.dot_dimension_numbers<[1], [0], [0], [1], [0, 0, 1, 1], [], []>} : vector<2x32xf32>, vector<32x128xf32>, vector<2x128xf32> -> vector<2x128xf32>
    %215 = arith.addf %213, %214 : vector<2x128xf32>
    %216 = arith.negf %215 : vector<2x128xf32>
    %217 = math.exp %216 : vector<2x128xf32>
    %cst_40 = arith.constant 1.000000e+00 : f32
    %218 = vector.broadcast %cst_40 : f32 to vector<2x128xf32>
    %219 = arith.addf %218, %217 : vector<2x128xf32>
    %220 = arith.divf %218, %219 : vector<2x128xf32>
    %221 = vector.extract_strided_slice %220 {offsets = [0, 0], sizes = [2, 32], strides = [1, 1]} : vector<2x128xf32> to vector<2x32xf32>
    %222 = vector.extract_strided_slice %220 {offsets = [0, 32], sizes = [2, 32], strides = [1, 1]} : vector<2x128xf32> to vector<2x32xf32>
    %223 = vector.extract_strided_slice %220 {offsets = [0, 64], sizes = [2, 32], strides = [1, 1]} : vector<2x128xf32> to vector<2x32xf32>
    %cst_41 = arith.constant 2.000000e+00 : f32
    %224 = vector.broadcast %cst_41 : f32 to vector<2x32xf32>
    %225 = arith.mulf %224, %223 : vector<2x32xf32>
    %cst_42 = arith.constant 1.000000e+00 : f32
    %226 = vector.broadcast %cst_42 : f32 to vector<2x32xf32>
    %227 = arith.subf %225, %226 : vector<2x32xf32>
    %228 = vector.extract_strided_slice %220 {offsets = [0, 96], sizes = [2, 32], strides = [1, 1]} : vector<2x128xf32> to vector<2x32xf32>
    %229 = arith.mulf %222, %212 : vector<2x32xf32>
    %230 = arith.mulf %221, %227 : vector<2x32xf32>
    %231 = arith.addf %229, %230 : vector<2x32xf32>
    %232 = math.tanh %231 : vector<2x32xf32>
    %233 = arith.mulf %228, %232 : vector<2x32xf32>
    %c0_i32 = arith.constant 0 : i32
    %234 = vector.broadcast %c0_i32 : i32 to vector<2x1xi32>
    %235 = arith.cmpi sgt, %7, %234 : vector<2x1xi32>
    %236 = vector.shape_cast %235 : vector<2x1xi1> to vector<2x1xi1>
    %237 = vector.broadcast %236 : vector<2x1xi1> to vector<2x32xi1>
    %238 = arith.select %237, %233, %209 : vector<2x32xi1>, vector<2x32xf32>
    %c0_43 = arith.constant 0 : index
    %c0_44 = arith.constant 0 : index
    %239 = vector.load %arg6[%c0_43, %c0_44] : memref<32x16xf32, #tpu.memory_space<vmem>>, vector<32x16xf32>
    %cst_45 = arith.constant dense<0.000000e+00> : vector<2x16xf32>
    %240 = tpu.matmul %238, %239, %cst_45 {dimension_numbers = #tpu.dot_dimension_numbers<[1], [0], [0], [1], [0, 0, 1, 1], [], []>} : vector<2x32xf32>, vector<32x16xf32>, vector<2x16xf32> -> vector<2x16xf32>
    %c0_46 = arith.constant 0 : index
    %c0_47 = arith.constant 0 : index
    %241 = vector.load %arg5[%c0_46, %c0_47] : memref<2x8xf32, #tpu.memory_space<vmem>>, vector<2x8xf32>
    %c0_48 = arith.constant 0 : index
    %c0_49 = arith.constant 0 : index
    %242 = vector.load %arg7[%c0_48, %c0_49] : memref<8x16xf32, #tpu.memory_space<vmem>>, vector<8x16xf32>
    %cst_50 = arith.constant dense<0.000000e+00> : vector<2x16xf32>
    %243 = tpu.matmul %241, %242, %cst_50 {dimension_numbers = #tpu.dot_dimension_numbers<[1], [0], [0], [1], [0, 0, 1, 1], [], []>} : vector<2x8xf32>, vector<8x16xf32>, vector<2x16xf32> -> vector<2x16xf32>
    %244 = arith.addf %240, %243 : vector<2x16xf32>
    %c0_51 = arith.constant 0 : index
    %c0_52 = arith.constant 0 : index
    %245 = vector.load %arg8[%c0_51, %c0_52] : memref<1x16xf32, #tpu.memory_space<vmem>>, vector<1x16xf32>
    %246 = vector.broadcast %245 : vector<1x16xf32> to vector<2x16xf32>
    %247 = arith.addf %244, %246 : vector<2x16xf32>
    %248 = math.tanh %247 : vector<2x16xf32>
    %c0_53 = arith.constant 0 : index
    %c0_54 = arith.constant 0 : index
    %249 = vector.load %arg9[%c0_53, %c0_54] : memref<2x16xf32, #tpu.memory_space<vmem>>, vector<2x16xf32>
    tpu.vector_store %arg9[%c0_53, %c0_54], %248 {strides = array<i32>} : memref<2x16xf32, #tpu.memory_space<vmem>>, vector<2x16xf32>,
    return
  }
}

</mosaic_0001>

<llo_original>
// kernel: text_only_rnn_forward.1
$region0: #{text_only_rnn_forward.1}
  #allocation0 [shape = 'u32[]', space=smem, size = 0x4, offset = 0x4, fixed_abs, tag = 'smem constant byte address 0x4 - core index']
  #allocation1 [shape = 'u32[144,128]{1,0:T(1,128)}', space=vmem, size = 0x12000, scoped, tag = 'internal scratch']
  %s0 = inlined_call_operand.vmem [shape: f32[16,24], index: 0, kind: input, shape index: {}]
  %s1 = inlined_call_operand.vmem [shape: s32[2,1], index: 1, kind: input, shape index: {}]
  %s2 = inlined_call_operand.vmem [shape: f32[24,128], index: 2, kind: input, shape index: {}]
  %s3 = inlined_call_operand.vmem [shape: f32[32,128], index: 3, kind: input, shape index: {}]
  %s4 = inlined_call_operand.vmem [shape: f32[1,128], index: 4, kind: input, shape index: {}]
  %s5 = inlined_call_operand.vmem [shape: f32[2,8], index: 5, kind: input, shape index: {}]
  %s6 = inlined_call_operand.vmem [shape: f32[32,16], index: 6, kind: input, shape index: {}]
  %s7 = inlined_call_operand.vmem [shape: f32[8,16], index: 7, kind: input, shape index: {}]
  %s8 = inlined_call_operand.vmem [shape: f32[1,16], index: 8, kind: input, shape index: {}]
  %s9 = inlined_call_operand.hbm [shape: f32[2,16], index: 9, kind: output, shape index: {}]
  %s10 = sld [smem:[#allocation0]]
  $region46: #{text_only_rnn_forward.1} parent=0
    _
  %s12 = ssub.s32 1, %s10
  %s13 = scalar_select 0, %s12, %s10
  $region1: #{text_only_rnn_forward.1} parent=0
    #allocation2 [shape = 'u8[1024]{0}', space=vmem, size = 0x400, scoped, tag = 'output window, operand 0, single buffered']
    #allocation3 [shape = 's32[1]{0}', space=sflag, size = 0x4, scoped, tag = 'scoped memory for text_only_rnn_forward.1']
    %14 = vsyncpa [#allocation3], 0
    // Predicated region
    $region2: #{text_only_rnn_forward.1} parent=1 // pred_check
      _
    $region3: #{text_only_rnn_forward.1} parent=1 // pred_check_branch
      %16 = sbr.rel (0) target = $region5
    $region4: #{text_only_rnn_forward.1} parent=1 // pred_region
      _
    $region5: #{text_only_rnn_forward.1} parent=1 // pred_fallthru
      _
    // Predicated region
    $region6: #{text_only_rnn_forward.1} parent=1 // pred_check
      _
    $region7: #{text_only_rnn_forward.1} parent=1 // pred_check_branch
      %18 = sbr.rel (0) target = $region9
    $region8: #{text_only_rnn_forward.1} parent=1 // pred_region
      _
    $region9: #{text_only_rnn_forward.1} parent=1 // pred_fallthru
      _
    // Predicated region
    $region10: #{text_only_rnn_forward.1} parent=1 // pred_check
      _
    $region11: #{text_only_rnn_forward.1} parent=1 // pred_check_branch
      %20 = sbr.rel (0) target = $region13
    $region12: #{text_only_rnn_forward.1} parent=1 // pred_region
      _
    $region13: #{text_only_rnn_forward.1} parent=1 // pred_fallthru
      _
    // Predicated region
    $region14: #{text_only_rnn_forward.1} parent=1 // pred_check
      _
    $region15: #{text_only_rnn_forward.1} parent=1 // pred_check_branch
      %22 = sbr.rel (0) target = $region17
    $region16: #{text_only_rnn_forward.1} parent=1 // pred_region
      _
    $region17: #{text_only_rnn_forward.1} parent=1 // pred_fallthru
      _
    // Predicated region
    $region18: #{text_only_rnn_forward.1} parent=1 // pred_check
      _
    $region19: #{text_only_rnn_forward.1} parent=1 // pred_check_branch
      %24 = sbr.rel (0) target = $region21
    $region20: #{text_only_rnn_forward.1} parent=1 // pred_region
      _
    $region21: #{text_only_rnn_forward.1} parent=1 // pred_fallthru
      _
    // Predicated region
    $region22: #{text_only_rnn_forward.1} parent=1 // pred_check
      _
    $region23: #{text_only_rnn_forward.1} parent=1 // pred_check_branch
      %26 = sbr.rel (0) target = $region25
    $region24: #{text_only_rnn_forward.1} parent=1 // pred_region
      _
    $region25: #{text_only_rnn_forward.1} parent=1 // pred_fallthru
      _
    // Predicated region
    $region26: #{text_only_rnn_forward.1} parent=1 // pred_check
      _
    $region27: #{text_only_rnn_forward.1} parent=1 // pred_check_branch
      %28 = sbr.rel (0) target = $region29
    $region28: #{text_only_rnn_forward.1} parent=1 // pred_region
      _
    $region29: #{text_only_rnn_forward.1} parent=1 // pred_fallthru
      _
    // Predicated region
    $region30: #{text_only_rnn_forward.1} parent=1 // pred_check
      _
    $region31: #{text_only_rnn_forward.1} parent=1 // pred_check_branch
      %30 = sbr.rel (0) target = $region33
    $region32: #{text_only_rnn_forward.1} parent=1 // pred_region
      _
    $region33: #{text_only_rnn_forward.1} parent=1 // pred_fallthru
      _
    // Predicated region
    $region34: #{text_only_rnn_forward.1} parent=1 // pred_check
      _
    $region35: #{text_only_rnn_forward.1} parent=1 // pred_check_branch
      %32 = sbr.rel (0) target = $region37
    $region36: #{text_only_rnn_forward.1} parent=1 // pred_region
      _
    $region37: #{text_only_rnn_forward.1} parent=1 // pred_fallthru
      _
    %v33 = vld [vmem:[%s0] sm:$0xff]
    %v34 = vld [vmem:[%s0 + $0x8] sm:$0xff]
    %v35 = vld [vmem:[%s2] sm:$0xff]
    %v36 = vld [vmem:[%s2 + $0x8] sm:$0xff]
    %v37 = vld [vmem:[%s2 + $0x10] sm:$0xff]
    %v38 = vld [vmem:[%s4] sm:$0x1]
    %v40 = vlaneseq
    %v41 = vshrl.u32 %v40, 7
    %v42 = vsub.s32 0, %v41
    %v43 = vrot.slane %v38, %v42
    %vm45 = vcmask 195584
    %v47 = vsel %vm45, %v33, 0
    %v50 = vsel %vm45, %v34, 0
    %52 = vmatprep.subr.mxu0 0.0
    %53 = vmatpush1.msra.mxu0 %v35
    %54 = vmatprep.subr.mxu0 0.0
    %55 = vmatpush1.msra.mxu0 %v36
    %56 = vmatprep.subr.mxu0 0.0
    %57 = vmatpush1.msra.mxu0 %v37
    %58 = vmatprep.subr.mxu0 0.0
    %59 = vmatpush1.msra.mxu0 0.0
    %60 = vmatprep.subr.mxu0 0.0
    %61 = vmatpush1.msra.mxu0 0.0
    %62 = vmatprep.subr.mxu0 0.0
    %63 = vmatpush1.msra.mxu0 0.0
    %64 = vmatprep.subr.mxu0 0.0
    %65 = vmatpush1.msra.mxu0 0.0
    %66 = vmatprep.subr.mxu0 0.0
    %67 = vmatpush1.msra.mxu0 0.0
    %68 = vmatprep.subr.mxu0 0.0
    %69 = vmatpush1.msra.mxu0 0.0
    %70 = vmatprep.subr.mxu0 0.0
    %71 = vmatpush1.msra.mxu0 0.0
    %72 = vmatprep.subr.mxu0 0.0
    %73 = vmatpush1.msra.mxu0 0.0
    %74 = vmatprep.subr.mxu0 0.0
    %75 = vmatpush1.msra.mxu0 0.0
    %76 = vmatprep.subr.mxu0 0.0
    %77 = vmatpush1.msra.mxu0 0.0
    %78 = vmatprep.subr.mxu0 0.0
    %79 = vmatpush1.msra.mxu0 0.0
    %80 = vmatprep.subr.mxu0 0.0
    %81 = vmatpush1.msra.mxu0 0.0
    %82 = vmatprep.subr.mxu0 0.0
    %83 = vmatpush1.msra.mxu0 0.0
    %84 = vmatprep.subr.mxu0 0.0
    %85 = vmatpush1.msra.mxu0 0.0
    %86 = vmatprep.subr.mxu0 0.0
    %87 = vmatpush1.msra.mxu0 0.0
    %88 = vmatprep.subr.mxu0 0.0
    %89 = vmatpush1.msra.mxu0 0.0
    %90 = vmatprep.subr.mxu0 0.0
    %91 = vmatpush1.msra.mxu0 0.0
    %92 = vmatprep.subr.mxu0 0.0
    %93 = vmatpush1.msra.mxu0 0.0
    %94 = vmatprep.subr.mxu0 0.0
    %95 = vmatpush1.msra.mxu0 0.0
    %96 = vmatprep.subr.mxu0 0.0
    %97 = vmatpush1.msra.mxu0 0.0
    %98 = vmatprep.subr.mxu0 0.0
    %99 = vmatpush1.msra.mxu0 0.0
    %100 = vmatprep.subr.mxu0 0.0
    %101 = vmatpush1.msra.mxu0 0.0
    %102 = vmatprep.subr.mxu0 0.0
    %103 = vmatpush1.msra.mxu0 0.0
    %104 = vmatprep.subr.mxu0 0.0
    %105 = vmatpush1.msra.mxu0 0.0
    %106 = vmatprep.subr.mxu0 0.0
    %107 = vmatpush1.msra.mxu0 0.0
    %108 = vmatprep.subr.mxu0 0.0
    %109 = vmatpush1.msra.mxu0 0.0
    %110 = vmatprep.subr.mxu0 0.0
    %111 = vmatpush1.msra.mxu0 0.0
    %112 = vmatprep.subr.mxu0 0.0
    %113 = vmatpush1.msra.mxu0 0.0
    %114 = vmatprep.subr.mxu0 0.0
    %115 = vmatpush1.msra.mxu0 0.0
    %116 = vmatprep.mubr.f32.mxu0 0.0
    %117 = vmatmul.mubr.f32.gmra.mrb[0].mxu0 %v47
    %v118 = vpop.f32.mrb[0].mxu0
    %v119 = vadd.f32 %v43, %v118
    %v120 = vpop.f32.mrb[0].mxu0
    %121 = vmatprep.mubr.f32.mxu0 0.0
    %122 = vmatmul.mubr.f32.gmra.mrb[0].mxu0 %v50
    %v123 = vpop.f32.mrb[0].mxu0
    %v124 = vadd.f32 %v43, %v123
    %v125 = vpop.f32.mrb[0].mxu0
    %126 = vdwg.mxu0
    %v127 = vld [vmem:[%s3] sm:$0xff]
    %v128 = vld [vmem:[%s3 + $0x8] sm:$0xff]
    %v129 = vld [vmem:[%s3 + $0x10] sm:$0xff]
    %v130 = vld [vmem:[%s3 + $0x18] sm:$0xff]
    %v131 = vld [vmem:[%s1] sm:$0x3]
    %vm132 = vcmask 261120
    %v134 = vsel %vm132, 0.0, 0
    %136 = vmatprep.subr.mxu0 0.0
    %137 = vmatpush1.msra.mxu0 %v127
    %138 = vmatprep.subr.mxu0 0.0
    %139 = vmatpush1.msra.mxu0 %v128
    %140 = vmatprep.subr.mxu0 0.0
    %141 = vmatpush1.msra.mxu0 %v129
    %142 = vmatprep.subr.mxu0 0.0
    %143 = vmatpush1.msra.mxu0 %v130
    %144 = vmatprep.subr.mxu0 0.0
    %145 = vmatpush1.msra.mxu0 0.0
    %146 = vmatprep.subr.mxu0 0.0
    %147 = vmatpush1.msra.mxu0 0.0
    %148 = vmatprep.subr.mxu0 0.0
    %149 = vmatpush1.msra.mxu0 0.0
    %150 = vmatprep.subr.mxu0 0.0
    %151 = vmatpush1.msra.mxu0 0.0
    %152 = vmatprep.subr.mxu0 0.0
    %153 = vmatpush1.msra.mxu0 0.0
    %154 = vmatprep.subr.mxu0 0.0
    %155 = vmatpush1.msra.mxu0 0.0
    %156 = vmatprep.subr.mxu0 0.0
    %157 = vmatpush1.msra.mxu0 0.0
    %158 = vmatprep.subr.mxu0 0.0
    %159 = vmatpush1.msra.mxu0 0.0
    %160 = vmatprep.subr.mxu0 0.0
    %161 = vmatpush1.msra.mxu0 0.0
    %162 = vmatprep.subr.mxu0 0.0
    %163 = vmatpush1.msra.mxu0 0.0
    %164 = vmatprep.subr.mxu0 0.0
    %165 = vmatpush1.msra.mxu0 0.0
    %166 = vmatprep.subr.mxu0 0.0
    %167 = vmatpush1.msra.mxu0 0.0
    %168 = vmatprep.subr.mxu0 0.0
    %169 = vmatpush1.msra.mxu0 0.0
    %170 = vmatprep.subr.mxu0 0.0
    %171 = vmatpush1.msra.mxu0 0.0
    %172 = vmatprep.subr.mxu0 0.0
    %173 = vmatpush1.msra.mxu0 0.0
    %174 = vmatprep.subr.mxu0 0.0
    %175 = vmatpush1.msra.mxu0 0.0
    %176 = vmatprep.subr.mxu0 0.0
    %177 = vmatpush1.msra.mxu0 0.0
    %178 = vmatprep.subr.mxu0 0.0
    %179 = vmatpush1.msra.mxu0 0.0
    %180 = vmatprep.subr.mxu0 0.0
    %181 = vmatpush1.msra.mxu0 0.0
    %182 = vmatprep.subr.mxu0 0.0
    %183 = vmatpush1.msra.mxu0 0.0
    %184 = vmatprep.subr.mxu0 0.0
    %185 = vmatpush1.msra.mxu0 0.0
    %186 = vmatprep.subr.mxu0 0.0
    %187 = vmatpush1.msra.mxu0 0.0
    %188 = vmatprep.subr.mxu0 0.0
    %189 = vmatpush1.msra.mxu0 0.0
    %190 = vmatprep.subr.mxu0 0.0
    %191 = vmatpush1.msra.mxu0 0.0
    %192 = vmatprep.subr.mxu0 0.0
    %193 = vmatpush1.msra.mxu0 0.0
    %194 = vmatprep.subr.mxu0 0.0
    %195 = vmatpush1.msra.mxu0 0.0
    %196 = vmatprep.subr.mxu0 0.0
    %197 = vmatpush1.msra.mxu0 0.0
    %198 = vmatprep.subr.mxu0 0.0
    %199 = vmatpush1.msra.mxu0 0.0
    %200 = vmatprep.mubr.f32.mxu0 0.0
    %201 = vmatmul.mubr.f32.gmra.mrb[0].mxu0 %v134
    %v202 = vpop.f32.mrb[0].mxu0
    %v203 = vadd.f32 0.0, %v202
    %v204 = vpop.f32.mrb[0].mxu0
    %205 = vdwg.mxu0
    %v207 = vrot.slane %v203, 2
    %v209 = vadd.f32 %v124, %v207
    %v210 = vxor.u32 %v209, 2147483648
    %v211 = vmul.f32 %v210, 1.442695
    %v212 = vpow.pop %v211
    %v213 = vadd.f32 %v212, 1.0
    %v214 = vrcp.pop %v213
    %v215 = vmul.f32 1.0, %v214
    %v216 = vmul.f32 %v215, 2.0
    %v217 = vsub.f32 %v216, 1.0
    %v218 = vmul.f32 %v215, 0.0
    %220 = vrot.lane.b32.xlu0 %v217, 64
    %v221 = vpop.permute.xlu0 %220
    %v223 = vmul.f32 %v215, %v221
    %225 = vrot.lane.b32.xlu0 %v223, 32
    %v226 = vpop.permute.xlu0 %225
    %v228 = vadd.f32 %v218, %v226
    %v229 = vtanh.pop %v228
    %231 = vrot.lane.b32.xlu0 %v229, 64
    %v232 = vpop.permute.xlu0 %231
    %v234 = vmul.f32 %v215, %v232
    %vm235 = vcmp.gt.s32.totalorder %v131, 7
    %v236 = vsel %vm235, 1, 0
    %237 = vset.pattern.permute.xlu0 0
    %238 = vperm.xlu0 %237, %v236
    %v239 = vpop.permute.xlu0 %238
    %vm240 = vcmp.eq.s32.totalorder %v239, 1
    %v242 = vrot.slane %v234, 6
    %243 = vrot.lane.b32.xlu0 %v242, 32
    %v244 = vpop.permute.xlu0 %243
    %v246 = vsel %vm240, %v244, 0.0
    %v248 = vrot.slane %v228, 6
    %249 = vrot.lane.b32.xlu0 %v248, 96
    %v250 = vpop.permute.xlu0 %249
    %v252 = vsel %vm240, %v250, 0.0
    %v254 = vsel %vm132, %v246, 0
    %256 = vmatprep.subr.mxu0 0.0
    %257 = vmatpush1.msra.mxu0 %v127
    %258 = vmatprep.subr.mxu0 0.0
    %259 = vmatpush1.msra.mxu0 %v128
    %260 = vmatprep.subr.mxu0 0.0
    %261 = vmatpush1.msra.mxu0 %v129
    %262 = vmatprep.subr.mxu0 0.0
    %263 = vmatpush1.msra.mxu0 %v130
    %264 = vmatprep.subr.mxu0 0.0
    %265 = vmatpush1.msra.mxu0 0.0
    %266 = vmatprep.subr.mxu0 0.0
    %267 = vmatpush1.msra.mxu0 0.0
    %268 = vmatprep.subr.mxu0 0.0
    %269 = vmatpush1.msra.mxu0 0.0
    %270 = vmatprep.subr.mxu0 0.0
    %271 = vmatpush1.msra.mxu0 0.0
    %272 = vmatprep.subr.mxu0 0.0
    %273 = vmatpush1.msra.mxu0 0.0
    %274 = vmatprep.subr.mxu0 0.0
    %275 = vmatpush1.msra.mxu0 0.0
    %276 = vmatprep.subr.mxu0 0.0
    %277 = vmatpush1.msra.mxu0 0.0
    %278 = vmatprep.subr.mxu0 0.0
    %279 = vmatpush1.msra.mxu0 0.0
    %280 = vmatprep.subr.mxu0 0.0
    %281 = vmatpush1.msra.mxu0 0.0
    %282 = vmatprep.subr.mxu0 0.0
    %283 = vmatpush1.msra.mxu0 0.0
    %284 = vmatprep.subr.mxu0 0.0
    %285 = vmatpush1.msra.mxu0 0.0
    %286 = vmatprep.subr.mxu0 0.0
    %287 = vmatpush1.msra.mxu0 0.0
    %288 = vmatprep.subr.mxu0 0.0
    %289 = vmatpush1.msra.mxu0 0.0
    %290 = vmatprep.subr.mxu0 0.0
    %291 = vmatpush1.msra.mxu0 0.0
    %292 = vmatprep.subr.mxu0 0.0
    %293 = vmatpush1.msra.mxu0 0.0
    %294 = vmatprep.subr.mxu0 0.0
    %295 = vmatpush1.msra.mxu0 0.0
    %296 = vmatprep.subr.mxu0 0.0
    %297 = vmatpush1.msra.mxu0 0.0
    %298 = vmatprep.subr.mxu0 0.0
    %299 = vmatpush1.msra.mxu0 0.0
    %300 = vmatprep.subr.mxu0 0.0
    %301 = vmatpush1.msra.mxu0 0.0
    %302 = vmatprep.subr.mxu0 0.0
    %303 = vmatpush1.msra.mxu0 0.0
    %304 = vmatprep.subr.mxu0 0.0
    %305 = vmatpush1.msra.mxu0 0.0
    %306 = vmatprep.subr.mxu0 0.0
    %307 = vmatpush1.msra.mxu0 0.0
    %308 = vmatprep.subr.mxu0 0.0
    %309 = vmatpush1.msra.mxu0 0.0
    %310 = vmatprep.subr.mxu0 0.0
    %311 = vmatpush1.msra.mxu0 0.0
    %312 = vmatprep.subr.mxu0 0.0
    %313 = vmatpush1.msra.mxu0 0.0
    %314 = vmatprep.subr.mxu0 0.0
    %315 = vmatpush1.msra.mxu0 0.0
    %316 = vmatprep.subr.mxu0 0.0
    %317 = vmatpush1.msra.mxu0 0.0
    %318 = vmatprep.subr.mxu0 0.0
    %319 = vmatpush1.msra.mxu0 0.0
    %320 = vmatprep.mubr.f32.mxu0 0.0
    %321 = vmatmul.mubr.f32.gmra.mrb[0].mxu0 %v254
    %v322 = vpop.f32.mrb[0].mxu0
    %v323 = vadd.f32 0.0, %v322
    %v324 = vpop.f32.mrb[0].mxu0
    %325 = vdwg.mxu0
    %v327 = vrot.slane %v323, 4
    %v329 = vadd.f32 %v124, %v327
    %v330 = vxor.u32 %v329, 2147483648
    %v331 = vmul.f32 %v330, 1.442695
    %v332 = vpow.pop %v331
    %v333 = vadd.f32 %v332, 1.0
    %v334 = vrcp.pop %v333
    %v335 = vmul.f32 1.0, %v334
    %v336 = vmul.f32 %v335, 2.0
    %v337 = vsub.f32 %v336, 1.0
    %v339 = vrot.slane %v252, 4
    %340 = vrot.lane.b32.xlu0 %v339, 32
    %v341 = vpop.permute.xlu0 %340
    %v343 = vmul.f32 %v335, %v341
    %345 = vrot.lane.b32.xlu0 %v337, 64
    %v346 = vpop.permute.xlu0 %345
    %v348 = vmul.f32 %v335, %v346
    %350 = vrot.lane.b32.xlu0 %v348, 32
    %v351 = vpop.permute.xlu0 %350
    %v353 = vadd.f32 %v343, %v351
    %v354 = vtanh.pop %v353
    %356 = vrot.lane.b32.xlu0 %v354, 64
    %v357 = vpop.permute.xlu0 %356
    %v359 = vmul.f32 %v335, %v357
    %vm360 = vcmp.gt.s32.totalorder %v131, 6
    %v361 = vsel %vm360, 1, 0
    %362 = vset.pattern.permute.xlu0 0
    %363 = vperm.xlu0 %362, %v361
    %v364 = vpop.permute.xlu0 %363
    %vm365 = vcmp.eq.s32.totalorder %v364, 1
    %v367 = vrot.slane %v359, 4
    %368 = vrot.lane.b32.xlu0 %v367, 32
    %v369 = vpop.permute.xlu0 %368
    %v371 = vsel %vm365, %v369, %v246
    %v373 = vrot.slane %v353, 4
    %374 = vrot.lane.b32.xlu0 %v373, 96
    %v375 = vpop.permute.xlu0 %374
    %v377 = vsel %vm365, %v375, %v252
    %v379 = vsel %vm132, %v371, 0
    %381 = vmatprep.subr.mxu0 0.0
    %382 = vmatpush1.msra.mxu0 %v127
    %383 = vmatprep.subr.mxu0 0.0
    %384 = vmatpush1.msra.mxu0 %v128
    %385 = vmatprep.subr.mxu0 0.0
    %386 = vmatpush1.msra.mxu0 %v129
    %387 = vmatprep.subr.mxu0 0.0
    %388 = vmatpush1.msra.mxu0 %v130
    %389 = vmatprep.subr.mxu0 0.0
    %390 = vmatpush1.msra.mxu0 0.0
    %391 = vmatprep.subr.mxu0 0.0
    %392 = vmatpush1.msra.mxu0 0.0
    %393 = vmatprep.subr.mxu0 0.0
    %394 = vmatpush1.msra.mxu0 0.0
    %395 = vmatprep.subr.mxu0 0.0
    %396 = vmatpush1.msra.mxu0 0.0
    %397 = vmatprep.subr.mxu0 0.0
    %398 = vmatpush1.msra.mxu0 0.0
    %399 = vmatprep.subr.mxu0 0.0
    %400 = vmatpush1.msra.mxu0 0.0
    %401 = vmatprep.subr.mxu0 0.0
    %402 = vmatpush1.msra.mxu0 0.0
    %403 = vmatprep.subr.mxu0 0.0
    %404 = vmatpush1.msra.mxu0 0.0
    %405 = vmatprep.subr.mxu0 0.0
    %406 = vmatpush1.msra.mxu0 0.0
    %407 = vmatprep.subr.mxu0 0.0
    %408 = vmatpush1.msra.mxu0 0.0
    %409 = vmatprep.subr.mxu0 0.0
    %410 = vmatpush1.msra.mxu0 0.0
    %411 = vmatprep.subr.mxu0 0.0
    %412 = vmatpush1.msra.mxu0 0.0
    %413 = vmatprep.subr.mxu0 0.0
    %414 = vmatpush1.msra.mxu0 0.0
    %415 = vmatprep.subr.mxu0 0.0
    %416 = vmatpush1.msra.mxu0 0.0
    %417 = vmatprep.subr.mxu0 0.0
    %418 = vmatpush1.msra.mxu0 0.0
    %419 = vmatprep.subr.mxu0 0.0
    %420 = vmatpush1.msra.mxu0 0.0
    %421 = vmatprep.subr.mxu0 0.0
    %422 = vmatpush1.msra.mxu0 0.0
    %423 = vmatprep.subr.mxu0 0.0
    %424 = vmatpush1.msra.mxu0 0.0
    %425 = vmatprep.subr.mxu0 0.0
    %426 = vmatpush1.msra.mxu0 0.0
    %427 = vmatprep.subr.mxu0 0.0
    %428 = vmatpush1.msra.mxu0 0.0
    %429 = vmatprep.subr.mxu0 0.0
    %430 = vmatpush1.msra.mxu0 0.0
    %431 = vmatprep.subr.mxu0 0.0
    %432 = vmatpush1.msra.mxu0 0.0
    %433 = vmatprep.subr.mxu0 0.0
    %434 = vmatpush1.msra.mxu0 0.0
    %435 = vmatprep.subr.mxu0 0.0
    %436 = vmatpush1.msra.mxu0 0.0
    %437 = vmatprep.subr.mxu0 0.0
    %438 = vmatpush1.msra.mxu0 0.0
    %439 = vmatprep.subr.mxu0 0.0
    %440 = vmatpush1.msra.mxu0 0.0
    %441 = vmatprep.subr.mxu0 0.0
    %442 = vmatpush1.msra.mxu0 0.0
    %443 = vmatprep.subr.mxu0 0.0
    %444 = vmatpush1.msra.mxu0 0.0
    %445 = vmatprep.mubr.f32.mxu0 0.0
    %446 = vmatmul.mubr.f32.gmra.mrb[0].mxu0 %v379
    %v447 = vpop.f32.mrb[0].mxu0
    %v448 = vadd.f32 0.0, %v447
    %v449 = vpop.f32.mrb[0].mxu0
    %450 = vdwg.mxu0
    %v452 = vrot.slane %v448, 6
    %v454 = vadd.f32 %v124, %v452
    %v455 = vxor.u32 %v454, 2147483648
    %v456 = vmul.f32 %v455, 1.442695
    %v457 = vpow.pop %v456
    %v458 = vadd.f32 %v457, 1.0
    %v459 = vrcp.pop %v458
    %v460 = vmul.f32 1.0, %v459
    %v461 = vmul.f32 %v460, 2.0
    %v462 = vsub.f32 %v461, 1.0
    %v464 = vrot.slane %v377, 6
    %465 = vrot.lane.b32.xlu0 %v464, 32
    %v466 = vpop.permute.xlu0 %465
    %v468 = vmul.f32 %v460, %v466
    %470 = vrot.lane.b32.xlu0 %v462, 64
    %v471 = vpop.permute.xlu0 %470
    %v473 = vmul.f32 %v460, %v471
    %475 = vrot.lane.b32.xlu0 %v473, 32
    %v476 = vpop.permute.xlu0 %475
    %v478 = vadd.f32 %v468, %v476
    %v479 = vtanh.pop %v478
    %481 = vrot.lane.b32.xlu0 %v479, 64
    %v482 = vpop.permute.xlu0 %481
    %v484 = vmul.f32 %v460, %v482
    %vm485 = vcmp.gt.s32.totalorder %v131, 5
    %v486 = vsel %vm485, 1, 0
    %487 = vset.pattern.permute.xlu0 0
    %488 = vperm.xlu0 %487, %v486
    %v489 = vpop.permute.xlu0 %488
    %vm490 = vcmp.eq.s32.totalorder %v489, 1
    %v492 = vrot.slane %v484, 2
    %493 = vrot.lane.b32.xlu0 %v492, 32
    %v494 = vpop.permute.xlu0 %493
    %v496 = vsel %vm490, %v494, %v371
    %v498 = vrot.slane %v478, 2
    %499 = vrot.lane.b32.xlu0 %v498, 96
    %v500 = vpop.permute.xlu0 %499
    %v502 = vsel %vm490, %v500, %v377
    %v504 = vsel %vm132, %v496, 0
    %506 = vmatprep.subr.mxu0 0.0
    %507 = vmatpush1.msra.mxu0 %v127
    %508 = vmatprep.subr.mxu0 0.0
    %509 = vmatpush1.msra.mxu0 %v128
    %510 = vmatprep.subr.mxu0 0.0
    %511 = vmatpush1.msra.mxu0 %v129
    %512 = vmatprep.subr.mxu0 0.0
    %513 = vmatpush1.msra.mxu0 %v130
    %514 = vmatprep.subr.mxu0 0.0
    %515 = vmatpush1.msra.mxu0 0.0
    %516 = vmatprep.subr.mxu0 0.0
    %517 = vmatpush1.msra.mxu0 0.0
    %518 = vmatprep.subr.mxu0 0.0
    %519 = vmatpush1.msra.mxu0 0.0
    %520 = vmatprep.subr.mxu0 0.0
    %521 = vmatpush1.msra.mxu0 0.0
    %522 = vmatprep.subr.mxu0 0.0
    %523 = vmatpush1.msra.mxu0 0.0
    %524 = vmatprep.subr.mxu0 0.0
    %525 = vmatpush1.msra.mxu0 0.0
    %526 = vmatprep.subr.mxu0 0.0
    %527 = vmatpush1.msra.mxu0 0.0
    %528 = vmatprep.subr.mxu0 0.0
    %529 = vmatpush1.msra.mxu0 0.0
    %530 = vmatprep.subr.mxu0 0.0
    %531 = vmatpush1.msra.mxu0 0.0
    %532 = vmatprep.subr.mxu0 0.0
    %533 = vmatpush1.msra.mxu0 0.0
    %534 = vmatprep.subr.mxu0 0.0
    %535 = vmatpush1.msra.mxu0 0.0
    %536 = vmatprep.subr.mxu0 0.0
    %537 = vmatpush1.msra.mxu0 0.0
    %538 = vmatprep.subr.mxu0 0.0
    %539 = vmatpush1.msra.mxu0 0.0
    %540 = vmatprep.subr.mxu0 0.0
    %541 = vmatpush1.msra.mxu0 0.0
    %542 = vmatprep.subr.mxu0 0.0
    %543 = vmatpush1.msra.mxu0 0.0
    %544 = vmatprep.subr.mxu0 0.0
    %545 = vmatpush1.msra.mxu0 0.0
    %546 = vmatprep.subr.mxu0 0.0
    %547 = vmatpush1.msra.mxu0 0.0
    %548 = vmatprep.subr.mxu0 0.0
    %549 = vmatpush1.msra.mxu0 0.0
    %550 = vmatprep.subr.mxu0 0.0
    %551 = vmatpush1.msra.mxu0 0.0
    %552 = vmatprep.subr.mxu0 0.0
    %553 = vmatpush1.msra.mxu0 0.0
    %554 = vmatprep.subr.mxu0 0.0
    %555 = vmatpush1.msra.mxu0 0.0
    %556 = vmatprep.subr.mxu0 0.0
    %557 = vmatpush1.msra.mxu0 0.0
    %558 = vmatprep.subr.mxu0 0.0
    %559 = vmatpush1.msra.mxu0 0.0
    %560 = vmatprep.subr.mxu0 0.0
    %561 = vmatpush1.msra.mxu0 0.0
    %562 = vmatprep.subr.mxu0 0.0
    %563 = vmatpush1.msra.mxu0 0.0
    %564 = vmatprep.subr.mxu0 0.0
    %565 = vmatpush1.msra.mxu0 0.0
    %566 = vmatprep.subr.mxu0 0.0
    %567 = vmatpush1.msra.mxu0 0.0
    %568 = vmatprep.subr.mxu0 0.0
    %569 = vmatpush1.msra.mxu0 0.0
    %570 = vmatprep.mubr.f32.mxu0 0.0
    %571 = vmatmul.mubr.f32.gmra.mrb[0].mxu0 %v504
    %v572 = vpop.f32.mrb[0].mxu0
    %v573 = vadd.f32 0.0, %v572
    %v574 = vpop.f32.mrb[0].mxu0
    %575 = vdwg.mxu0
    %v576 = vadd.f32 %v124, %v573
    %v577 = vxor.u32 %v576, 2147483648
    %v578 = vmul.f32 %v577, 1.442695
    %v579 = vpow.pop %v578
    %v580 = vadd.f32 %v579, 1.0
    %v581 = vrcp.pop %v580
    %v582 = vmul.f32 1.0, %v581
    %v583 = vmul.f32 %v582, 2.0
    %v584 = vsub.f32 %v583, 1.0
    %586 = vrot.lane.b32.xlu0 %v502, 32
    %v587 = vpop.permute.xlu0 %586
    %v589 = vmul.f32 %v582, %v587
    %591 = vrot.lane.b32.xlu0 %v584, 64
    %v592 = vpop.permute.xlu0 %591
    %v594 = vmul.f32 %v582, %v592
    %596 = vrot.lane.b32.xlu0 %v594, 32
    %v597 = vpop.permute.xlu0 %596
    %v599 = vadd.f32 %v589, %v597
    %v600 = vtanh.pop %v599
    %602 = vrot.lane.b32.xlu0 %v600, 64
    %v603 = vpop.permute.xlu0 %602
    %v605 = vmul.f32 %v582, %v603
    %vm606 = vcmp.gt.s32.totalorder %v131, 4
    %v607 = vsel %vm606, 1, 0
    %608 = vset.pattern.permute.xlu0 0
    %609 = vperm.xlu0 %608, %v607
    %v610 = vpop.permute.xlu0 %609
    %vm611 = vcmp.eq.s32.totalorder %v610, 1
    %612 = vrot.lane.b32.xlu0 %v496, 96
    %v613 = vpop.permute.xlu0 %612
    %v615 = vsel %vm611, %v605, %v613
    %v616 = vsel %vm611, %v599, %v587
    %618 = vrot.lane.b32.xlu0 %v615, 32
    %v619 = vpop.permute.xlu0 %618
    %v620 = vsel %vm132, %v619, 0
    %622 = vmatprep.subr.mxu0 0.0
    %623 = vmatpush1.msra.mxu0 %v127
    %624 = vmatprep.subr.mxu0 0.0
    %625 = vmatpush1.msra.mxu0 %v128
    %626 = vmatprep.subr.mxu0 0.0
    %627 = vmatpush1.msra.mxu0 %v129
    %628 = vmatprep.subr.mxu0 0.0
    %629 = vmatpush1.msra.mxu0 %v130
    %630 = vmatprep.subr.mxu0 0.0
    %631 = vmatpush1.msra.mxu0 0.0
    %632 = vmatprep.subr.mxu0 0.0
    %633 = vmatpush1.msra.mxu0 0.0
    %634 = vmatprep.subr.mxu0 0.0
    %635 = vmatpush1.msra.mxu0 0.0
    %636 = vmatprep.subr.mxu0 0.0
    %637 = vmatpush1.msra.mxu0 0.0
    %638 = vmatprep.subr.mxu0 0.0
    %639 = vmatpush1.msra.mxu0 0.0
    %640 = vmatprep.subr.mxu0 0.0
    %641 = vmatpush1.msra.mxu0 0.0
    %642 = vmatprep.subr.mxu0 0.0
    %643 = vmatpush1.msra.mxu0 0.0
    %644 = vmatprep.subr.mxu0 0.0
    %645 = vmatpush1.msra.mxu0 0.0
    %646 = vmatprep.subr.mxu0 0.0
    %647 = vmatpush1.msra.mxu0 0.0
    %648 = vmatprep.subr.mxu0 0.0
    %649 = vmatpush1.msra.mxu0 0.0
    %650 = vmatprep.subr.mxu0 0.0
    %651 = vmatpush1.msra.mxu0 0.0
    %652 = vmatprep.subr.mxu0 0.0
    %653 = vmatpush1.msra.mxu0 0.0
    %654 = vmatprep.subr.mxu0 0.0
    %655 = vmatpush1.msra.mxu0 0.0
    %656 = vmatprep.subr.mxu0 0.0
    %657 = vmatpush1.msra.mxu0 0.0
    %658 = vmatprep.subr.mxu0 0.0
    %659 = vmatpush1.msra.mxu0 0.0
    %660 = vmatprep.subr.mxu0 0.0
    %661 = vmatpush1.msra.mxu0 0.0
    %662 = vmatprep.subr.mxu0 0.0
    %663 = vmatpush1.msra.mxu0 0.0
    %664 = vmatprep.subr.mxu0 0.0
    %665 = vmatpush1.msra.mxu0 0.0
    %666 = vmatprep.subr.mxu0 0.0
    %667 = vmatpush1.msra.mxu0 0.0
    %668 = vmatprep.subr.mxu0 0.0
    %669 = vmatpush1.msra.mxu0 0.0
    %670 = vmatprep.subr.mxu0 0.0
    %671 = vmatpush1.msra.mxu0 0.0
    %672 = vmatprep.subr.mxu0 0.0
    %673 = vmatpush1.msra.mxu0 0.0
    %674 = vmatprep.subr.mxu0 0.0
    %675 = vmatpush1.msra.mxu0 0.0
    %676 = vmatprep.subr.mxu0 0.0
    %677 = vmatpush1.msra.mxu0 0.0
    %678 = vmatprep.subr.mxu0 0.0
    %679 = vmatpush1.msra.mxu0 0.0
    %680 = vmatprep.subr.mxu0 0.0
    %681 = vmatpush1.msra.mxu0 0.0
    %682 = vmatprep.subr.mxu0 0.0
    %683 = vmatpush1.msra.mxu0 0.0
    %684 = vmatprep.subr.mxu0 0.0
    %685 = vmatpush1.msra.mxu0 0.0
    %686 = vmatprep.mubr.f32.mxu0 0.0
    %687 = vmatmul.mubr.f32.gmra.mrb[0].mxu0 %v620
    %v688 = vpop.f32.mrb[0].mxu0
    %v689 = vadd.f32 0.0, %v688
    %v690 = vpop.f32.mrb[0].mxu0
    %691 = vdwg.mxu0
    %v693 = vrot.slane %v689, 2
    %v695 = vadd.f32 %v119, %v693
    %v696 = vxor.u32 %v695, 2147483648
    %v697 = vmul.f32 %v696, 1.442695
    %v698 = vpow.pop %v697
    %v699 = vadd.f32 %v698, 1.0
    %v700 = vrcp.pop %v699
    %v701 = vmul.f32 1.0, %v700
    %v702 = vmul.f32 %v701, 2.0
    %v703 = vsub.f32 %v702, 1.0
    %v705 = vrot.slane %v616, 2
    %v707 = vmul.f32 %v701, %v705
    %709 = vrot.lane.b32.xlu0 %v703, 64
    %v710 = vpop.permute.xlu0 %709
    %v712 = vmul.f32 %v701, %v710
    %714 = vrot.lane.b32.xlu0 %v712, 32
    %v715 = vpop.permute.xlu0 %714
    %v717 = vadd.f32 %v707, %v715
    %v718 = vtanh.pop %v717
    %720 = vrot.lane.b32.xlu0 %v718, 64
    %v721 = vpop.permute.xlu0 %720
    %v723 = vmul.f32 %v701, %v721
    %vm724 = vcmp.gt.s32.totalorder %v131, 3
    %v725 = vsel %vm724, 1, 0
    %726 = vset.pattern.permute.xlu0 0
    %727 = vperm.xlu0 %726, %v725
    %v728 = vpop.permute.xlu0 %727
    %vm729 = vcmp.eq.s32.totalorder %v728, 1
    %v731 = vrot.slane %v723, 6
    %732 = vrot.lane.b32.xlu0 %v731, 32
    %v733 = vpop.permute.xlu0 %732
    %v736 = vsel %vm729, %v733, %v619
    %v738 = vrot.slane %v717, 6
    %739 = vrot.lane.b32.xlu0 %v738, 96
    %v740 = vpop.permute.xlu0 %739
    %742 = vrot.lane.b32.xlu0 %v616, 96
    %v743 = vpop.permute.xlu0 %742
    %v745 = vsel %vm729, %v740, %v743
    %v747 = vsel %vm132, %v736, 0
    %749 = vmatprep.subr.mxu0 0.0
    %750 = vmatpush1.msra.mxu0 %v127
    %751 = vmatprep.subr.mxu0 0.0
    %752 = vmatpush1.msra.mxu0 %v128
    %753 = vmatprep.subr.mxu0 0.0
    %754 = vmatpush1.msra.mxu0 %v129
    %755 = vmatprep.subr.mxu0 0.0
    %756 = vmatpush1.msra.mxu0 %v130
    %757 = vmatprep.subr.mxu0 0.0
    %758 = vmatpush1.msra.mxu0 0.0
    %759 = vmatprep.subr.mxu0 0.0
    %760 = vmatpush1.msra.mxu0 0.0
    %761 = vmatprep.subr.mxu0 0.0
    %762 = vmatpush1.msra.mxu0 0.0
    %763 = vmatprep.subr.mxu0 0.0
    %764 = vmatpush1.msra.mxu0 0.0
    %765 = vmatprep.subr.mxu0 0.0
    %766 = vmatpush1.msra.mxu0 0.0
    %767 = vmatprep.subr.mxu0 0.0
    %768 = vmatpush1.msra.mxu0 0.0
    %769 = vmatprep.subr.mxu0 0.0
    %770 = vmatpush1.msra.mxu0 0.0
    %771 = vmatprep.subr.mxu0 0.0
    %772 = vmatpush1.msra.mxu0 0.0
    %773 = vmatprep.subr.mxu0 0.0
    %774 = vmatpush1.msra.mxu0 0.0
    %775 = vmatprep.subr.mxu0 0.0
    %776 = vmatpush1.msra.mxu0 0.0
    %777 = vmatprep.subr.mxu0 0.0
    %778 = vmatpush1.msra.mxu0 0.0
    %779 = vmatprep.subr.mxu0 0.0
    %780 = vmatpush1.msra.mxu0 0.0
    %781 = vmatprep.subr.mxu0 0.0
    %782 = vmatpush1.msra.mxu0 0.0
    %783 = vmatprep.subr.mxu0 0.0
    %784 = vmatpush1.msra.mxu0 0.0
    %785 = vmatprep.subr.mxu0 0.0
    %786 = vmatpush1.msra.mxu0 0.0
    %787 = vmatprep.subr.mxu0 0.0
    %788 = vmatpush1.msra.mxu0 0.0
    %789 = vmatprep.subr.mxu0 0.0
    %790 = vmatpush1.msra.mxu0 0.0
    %791 = vmatprep.subr.mxu0 0.0
    %792 = vmatpush1.msra.mxu0 0.0
    %793 = vmatprep.subr.mxu0 0.0
    %794 = vmatpush1.msra.mxu0 0.0
    %795 = vmatprep.subr.mxu0 0.0
    %796 = vmatpush1.msra.mxu0 0.0
    %797 = vmatprep.subr.mxu0 0.0
    %798 = vmatpush1.msra.mxu0 0.0
    %799 = vmatprep.subr.mxu0 0.0
    %800 = vmatpush1.msra.mxu0 0.0
    %801 = vmatprep.subr.mxu0 0.0
    %802 = vmatpush1.msra.mxu0 0.0
    %803 = vmatprep.subr.mxu0 0.0
    %804 = vmatpush1.msra.mxu0 0.0
    %805 = vmatprep.subr.mxu0 0.0
    %806 = vmatpush1.msra.mxu0 0.0
    %807 = vmatprep.subr.mxu0 0.0
    %808 = vmatpush1.msra.mxu0 0.0
    %809 = vmatprep.subr.mxu0 0.0
    %810 = vmatpush1.msra.mxu0 0.0
    %811 = vmatprep.subr.mxu0 0.0
    %812 = vmatpush1.msra.mxu0 0.0
    %813 = vmatprep.mubr.f32.mxu0 0.0
    %814 = vmatmul.mubr.f32.gmra.mrb[0].mxu0 %v747
    %v815 = vpop.f32.mrb[0].mxu0
    %v816 = vadd.f32 0.0, %v815
    %v817 = vpop.f32.mrb[0].mxu0
    %818 = vdwg.mxu0
    %v820 = vrot.slane %v816, 4
    %v822 = vadd.f32 %v119, %v820
    %v823 = vxor.u32 %v822, 2147483648
    %v824 = vmul.f32 %v823, 1.442695
    %v825 = vpow.pop %v824
    %v826 = vadd.f32 %v825, 1.0
    %v827 = vrcp.pop %v826
    %v828 = vmul.f32 1.0, %v827
    %v829 = vmul.f32 %v828, 2.0
    %v830 = vsub.f32 %v829, 1.0
    %v832 = vrot.slane %v745, 4
    %833 = vrot.lane.b32.xlu0 %v832, 32
    %v834 = vpop.permute.xlu0 %833
    %v836 = vmul.f32 %v828, %v834
    %838 = vrot.lane.b32.xlu0 %v830, 64
    %v839 = vpop.permute.xlu0 %838
    %v841 = vmul.f32 %v828, %v839
    %843 = vrot.lane.b32.xlu0 %v841, 32
    %v844 = vpop.permute.xlu0 %843
    %v846 = vadd.f32 %v836, %v844
    %v847 = vtanh.pop %v846
    %849 = vrot.lane.b32.xlu0 %v847, 64
    %v850 = vpop.permute.xlu0 %849
    %v852 = vmul.f32 %v828, %v850
    %vm853 = vcmp.gt.s32.totalorder %v131, 2
    %v854 = vsel %vm853, 1, 0
    %855 = vset.pattern.permute.xlu0 0
    %856 = vperm.xlu0 %855, %v854
    %v857 = vpop.permute.xlu0 %856
    %vm858 = vcmp.eq.s32.totalorder %v857, 1
    %v860 = vrot.slane %v852, 4
    %861 = vrot.lane.b32.xlu0 %v860, 32
    %v862 = vpop.permute.xlu0 %861
    %v864 = vsel %vm858, %v862, %v736
    %v866 = vrot.slane %v846, 4
    %867 = vrot.lane.b32.xlu0 %v866, 96
    %v868 = vpop.permute.xlu0 %867
    %v870 = vsel %vm858, %v868, %v745
    %v872 = vsel %vm132, %v864, 0
    %874 = vmatprep.subr.mxu0 0.0
    %875 = vmatpush1.msra.mxu0 %v127
    %876 = vmatprep.subr.mxu0 0.0
    %877 = vmatpush1.msra.mxu0 %v128
    %878 = vmatprep.subr.mxu0 0.0
    %879 = vmatpush1.msra.mxu0 %v129
    %880 = vmatprep.subr.mxu0 0.0
    %881 = vmatpush1.msra.mxu0 %v130
    %882 = vmatprep.subr.mxu0 0.0
    %883 = vmatpush1.msra.mxu0 0.0
    %884 = vmatprep.subr.mxu0 0.0
    %885 = vmatpush1.msra.mxu0 0.0
    %886 = vmatprep.subr.mxu0 0.0
    %887 = vmatpush1.msra.mxu0 0.0
    %888 = vmatprep.subr.mxu0 0.0
    %889 = vmatpush1.msra.mxu0 0.0
    %890 = vmatprep.subr.mxu0 0.0
    %891 = vmatpush1.msra.mxu0 0.0
    %892 = vmatprep.subr.mxu0 0.0
    %893 = vmatpush1.msra.mxu0 0.0
    %894 = vmatprep.subr.mxu0 0.0
    %895 = vmatpush1.msra.mxu0 0.0
    %896 = vmatprep.subr.mxu0 0.0
    %897 = vmatpush1.msra.mxu0 0.0
    %898 = vmatprep.subr.mxu0 0.0
    %899 = vmatpush1.msra.mxu0 0.0
    %900 = vmatprep.subr.mxu0 0.0
    %901 = vmatpush1.msra.mxu0 0.0
    %902 = vmatprep.subr.mxu0 0.0
    %903 = vmatpush1.msra.mxu0 0.0
    %904 = vmatprep.subr.mxu0 0.0
    %905 = vmatpush1.msra.mxu0 0.0
    %906 = vmatprep.subr.mxu0 0.0
    %907 = vmatpush1.msra.mxu0 0.0
    %908 = vmatprep.subr.mxu0 0.0
    %909 = vmatpush1.msra.mxu0 0.0
    %910 = vmatprep.subr.mxu0 0.0
    %911 = vmatpush1.msra.mxu0 0.0
    %912 = vmatprep.subr.mxu0 0.0
    %913 = vmatpush1.msra.mxu0 0.0
    %914 = vmatprep.subr.mxu0 0.0
    %915 = vmatpush1.msra.mxu0 0.0
    %916 = vmatprep.subr.mxu0 0.0
    %917 = vmatpush1.msra.mxu0 0.0
    %918 = vmatprep.subr.mxu0 0.0
    %919 = vmatpush1.msra.mxu0 0.0
    %920 = vmatprep.subr.mxu0 0.0
    %921 = vmatpush1.msra.mxu0 0.0
    %922 = vmatprep.subr.mxu0 0.0
    %923 = vmatpush1.msra.mxu0 0.0
    %924 = vmatprep.subr.mxu0 0.0
    %925 = vmatpush1.msra.mxu0 0.0
    %926 = vmatprep.subr.mxu0 0.0
    %927 = vmatpush1.msra.mxu0 0.0
    %928 = vmatprep.subr.mxu0 0.0
    %929 = vmatpush1.msra.mxu0 0.0
    %930 = vmatprep.subr.mxu0 0.0
    %931 = vmatpush1.msra.mxu0 0.0
    %932 = vmatprep.subr.mxu0 0.0
    %933 = vmatpush1.msra.mxu0 0.0
    %934 = vmatprep.subr.mxu0 0.0
    %935 = vmatpush1.msra.mxu0 0.0
    %936 = vmatprep.subr.mxu0 0.0
    %937 = vmatpush1.msra.mxu0 0.0
    %938 = vmatprep.mubr.f32.mxu0 0.0
    %939 = vmatmul.mubr.f32.gmra.mrb[0].mxu0 %v872
    %v940 = vpop.f32.mrb[0].mxu0
    %v941 = vadd.f32 0.0, %v940
    %v942 = vpop.f32.mrb[0].mxu0
    %943 = vdwg.mxu0
    %v945 = vrot.slane %v941, 6
    %v947 = vadd.f32 %v119, %v945
    %v948 = vxor.u32 %v947, 2147483648
    %v949 = vmul.f32 %v948, 1.442695
    %v950 = vpow.pop %v949
    %v951 = vadd.f32 %v950, 1.0
    %v952 = vrcp.pop %v951
    %v953 = vmul.f32 1.0, %v952
    %v954 = vmul.f32 %v953, 2.0
    %v955 = vsub.f32 %v954, 1.0
    %v957 = vrot.slane %v870, 6
    %958 = vrot.lane.b32.xlu0 %v957, 32
    %v959 = vpop.permute.xlu0 %958
    %v961 = vmul.f32 %v953, %v959
    %963 = vrot.lane.b32.xlu0 %v955, 64
    %v964 = vpop.permute.xlu0 %963
    %v966 = vmul.f32 %v953, %v964
    %968 = vrot.lane.b32.xlu0 %v966, 32
    %v969 = vpop.permute.xlu0 %968
    %v971 = vadd.f32 %v961, %v969
    %v972 = vtanh.pop %v971
    %974 = vrot.lane.b32.xlu0 %v972, 64
    %v975 = vpop.permute.xlu0 %974
    %v977 = vmul.f32 %v953, %v975
    %vm978 = vcmp.gt.s32.totalorder %v131, 1
    %v979 = vsel %vm978, 1, 0
    %980 = vset.pattern.permute.xlu0 0
    %981 = vperm.xlu0 %980, %v979
    %v982 = vpop.permute.xlu0 %981
    %vm983 = vcmp.eq.s32.totalorder %v982, 1
    %v985 = vrot.slane %v977, 2
    %986 = vrot.lane.b32.xlu0 %v985, 32
    %v987 = vpop.permute.xlu0 %986
    %v989 = vsel %vm983, %v987, %v864
    %v991 = vrot.slane %v971, 2
    %992 = vrot.lane.b32.xlu0 %v991, 96
    %v993 = vpop.permute.xlu0 %992
    %v995 = vsel %vm983, %v993, %v870
    %v997 = vsel %vm132, %v989, 0
    %999 = vmatprep.subr.mxu0 0.0
    %1000 = vmatpush1.msra.mxu0 %v127
    %1001 = vmatprep.subr.mxu0 0.0
    %1002 = vmatpush1.msra.mxu0 %v128
    %1003 = vmatprep.subr.mxu0 0.0
    %1004 = vmatpush1.msra.mxu0 %v129
    %1005 = vmatprep.subr.mxu0 0.0
    %1006 = vmatpush1.msra.mxu0 %v130
    %1007 = vmatprep.subr.mxu0 0.0
    %1008 = vmatpush1.msra.mxu0 0.0
    %1009 = vmatprep.subr.mxu0 0.0
    %1010 = vmatpush1.msra.mxu0 0.0
    %1011 = vmatprep.subr.mxu0 0.0
    %1012 = vmatpush1.msra.mxu0 0.0
    %1013 = vmatprep.subr.mxu0 0.0
    %1014 = vmatpush1.msra.mxu0 0.0
    %1015 = vmatprep.subr.mxu0 0.0
    %1016 = vmatpush1.msra.mxu0 0.0
    %1017 = vmatprep.subr.mxu0 0.0
    %1018 = vmatpush1.msra.mxu0 0.0
    %1019 = vmatprep.subr.mxu0 0.0
    %1020 = vmatpush1.msra.mxu0 0.0
    %1021 = vmatprep.subr.mxu0 0.0
    %1022 = vmatpush1.msra.mxu0 0.0
    %1023 = vmatprep.subr.mxu0 0.0
    %1024 = vmatpush1.msra.mxu0 0.0
    %1025 = vmatprep.subr.mxu0 0.0
    %1026 = vmatpush1.msra.mxu0 0.0
    %1027 = vmatprep.subr.mxu0 0.0
    %1028 = vmatpush1.msra.mxu0 0.0
    %1029 = vmatprep.subr.mxu0 0.0
    %1030 = vmatpush1.msra.mxu0 0.0
    %1031 = vmatprep.subr.mxu0 0.0
    %1032 = vmatpush1.msra.mxu0 0.0
    %1033 = vmatprep.subr.mxu0 0.0
    %1034 = vmatpush1.msra.mxu0 0.0
    %1035 = vmatprep.subr.mxu0 0.0
    %1036 = vmatpush1.msra.mxu0 0.0
    %1037 = vmatprep.subr.mxu0 0.0
    %1038 = vmatpush1.msra.mxu0 0.0
    %1039 = vmatprep.subr.mxu0 0.0
    %1040 = vmatpush1.msra.mxu0 0.0
    %1041 = vmatprep.subr.mxu0 0.0
    %1042 = vmatpush1.msra.mxu0 0.0
    %1043 = vmatprep.subr.mxu0 0.0
    %1044 = vmatpush1.msra.mxu0 0.0
    %1045 = vmatprep.subr.mxu0 0.0
    %1046 = vmatpush1.msra.mxu0 0.0
    %1047 = vmatprep.subr.mxu0 0.0
    %1048 = vmatpush1.msra.mxu0 0.0
    %1049 = vmatprep.subr.mxu0 0.0
    %1050 = vmatpush1.msra.mxu0 0.0
    %1051 = vmatprep.subr.mxu0 0.0
    %1052 = vmatpush1.msra.mxu0 0.0
    %1053 = vmatprep.subr.mxu0 0.0
    %1054 = vmatpush1.msra.mxu0 0.0
    %1055 = vmatprep.subr.mxu0 0.0
    %1056 = vmatpush1.msra.mxu0 0.0
    %1057 = vmatprep.subr.mxu0 0.0
    %1058 = vmatpush1.msra.mxu0 0.0
    %1059 = vmatprep.subr.mxu0 0.0
    %1060 = vmatpush1.msra.mxu0 0.0
    %1061 = vmatprep.subr.mxu0 0.0
    %1062 = vmatpush1.msra.mxu0 0.0
    %1063 = vmatprep.mubr.f32.mxu0 0.0
    %1064 = vmatmul.mubr.f32.gmra.mrb[0].mxu0 %v997
    %v1065 = vpop.f32.mrb[0].mxu0
    %v1066 = vadd.f32 0.0, %v1065
    %v1067 = vpop.f32.mrb[0].mxu0
    %1068 = vdwg.mxu0
    %v1069 = vadd.f32 %v119, %v1066
    %v1070 = vxor.u32 %v1069, 2147483648
    %v1071 = vmul.f32 %v1070, 1.442695
    %v1072 = vpow.pop %v1071
    %v1073 = vadd.f32 %v1072, 1.0
    %v1074 = vrcp.pop %v1073
    %v1075 = vmul.f32 1.0, %v1074
    %v1076 = vmul.f32 %v1075, 2.0
    %v1077 = vsub.f32 %v1076, 1.0
    %1079 = vrot.lane.b32.xlu0 %v995, 32
    %v1080 = vpop.permute.xlu0 %1079
    %v1082 = vmul.f32 %v1075, %v1080
    %1084 = vrot.lane.b32.xlu0 %v1077, 64
    %v1085 = vpop.permute.xlu0 %1084
    %v1087 = vmul.f32 %v1075, %v1085
    %1089 = vrot.lane.b32.xlu0 %v1087, 32
    %v1090 = vpop.permute.xlu0 %1089
    %v1092 = vadd.f32 %v1082, %v1090
    %v1093 = vtanh.pop %v1092
    %1095 = vrot.lane.b32.xlu0 %v1093, 64
    %v1096 = vpop.permute.xlu0 %1095
    %v1098 = vmul.f32 %v1075, %v1096
    %vm1099 = vcmp.gt.s32.totalorder %v131, 0
    %v1100 = vsel %vm1099, 1, 0
    %1101 = vset.pattern.permute.xlu0 0
    %1102 = vperm.xlu0 %1101, %v1100
    %v1103 = vpop.permute.xlu0 %1102
    %vm1104 = vcmp.eq.s32.totalorder %v1103, 1
    %1105 = vrot.lane.b32.xlu0 %v989, 96
    %v1106 = vpop.permute.xlu0 %1105
    %v1108 = vsel %vm1104, %v1098, %v1106
    %v1109 = vld [vmem:[%s6] sm:$0xff]
    %v1110 = vld [vmem:[%s6 + $0x8] sm:$0xff]
    %v1111 = vld [vmem:[%s6 + $0x10] sm:$0xff]
    %v1112 = vld [vmem:[%s6 + $0x18] sm:$0xff]
    %v1113 = vld [vmem:[%s5] sm:$0x3]
    %v1114 = vld [vmem:[%s7] sm:$0xff]
    %vm1115 = vcmask 64512
    %v1117 = vsel %vm1115, %v1113, 0
    %1119 = vmatprep.subr.mxu0 0.0
    %1120 = vmatpush1.msra.mxu0 %v1114
    %1121 = vmatprep.subr.mxu0 0.0
    %1122 = vmatpush1.msra.mxu0 0.0
    %1123 = vmatprep.subr.mxu0 0.0
    %1124 = vmatpush1.msra.mxu0 0.0
    %1125 = vmatprep.subr.mxu0 0.0
    %1126 = vmatpush1.msra.mxu0 0.0
    %1127 = vmatprep.subr.mxu0 0.0
    %1128 = vmatpush1.msra.mxu0 0.0
    %1129 = vmatprep.subr.mxu0 0.0
    %1130 = vmatpush1.msra.mxu0 0.0
    %1131 = vmatprep.subr.mxu0 0.0
    %1132 = vmatpush1.msra.mxu0 0.0
    %1133 = vmatprep.subr.mxu0 0.0
    %1134 = vmatpush1.msra.mxu0 0.0
    %1135 = vmatprep.subr.mxu0 0.0
    %1136 = vmatpush1.msra.mxu0 0.0
    %1137 = vmatprep.subr.mxu0 0.0
    %1138 = vmatpush1.msra.mxu0 0.0
    %1139 = vmatprep.subr.mxu0 0.0
    %1140 = vmatpush1.msra.mxu0 0.0
    %1141 = vmatprep.subr.mxu0 0.0
    %1142 = vmatpush1.msra.mxu0 0.0
    %1143 = vmatprep.subr.mxu0 0.0
    %1144 = vmatpush1.msra.mxu0 0.0
    %1145 = vmatprep.subr.mxu0 0.0
    %1146 = vmatpush1.msra.mxu0 0.0
    %1147 = vmatprep.subr.mxu0 0.0
    %1148 = vmatpush1.msra.mxu0 0.0
    %1149 = vmatprep.subr.mxu0 0.0
    %1150 = vmatpush1.msra.mxu0 0.0
    %1151 = vmatprep.subr.mxu0 0.0
    %1152 = vmatpush1.msra.mxu0 0.0
    %1153 = vmatprep.subr.mxu0 0.0
    %1154 = vmatpush1.msra.mxu0 0.0
    %1155 = vmatprep.subr.mxu0 0.0
    %1156 = vmatpush1.msra.mxu0 0.0
    %1157 = vmatprep.subr.mxu0 0.0
    %1158 = vmatpush1.msra.mxu0 0.0
    %1159 = vmatprep.subr.mxu0 0.0
    %1160 = vmatpush1.msra.mxu0 0.0
    %1161 = vmatprep.subr.mxu0 0.0
    %1162 = vmatpush1.msra.mxu0 0.0
    %1163 = vmatprep.subr.mxu0 0.0
    %1164 = vmatpush1.msra.mxu0 0.0
    %1165 = vmatprep.subr.mxu0 0.0
    %1166 = vmatpush1.msra.mxu0 0.0
    %1167 = vmatprep.subr.mxu0 0.0
    %1168 = vmatpush1.msra.mxu0 0.0
    %1169 = vmatprep.subr.mxu0 0.0
    %1170 = vmatpush1.msra.mxu0 0.0
    %1171 = vmatprep.subr.mxu0 0.0
    %1172 = vmatpush1.msra.mxu0 0.0
    %1173 = vmatprep.subr.mxu0 0.0
    %1174 = vmatpush1.msra.mxu0 0.0
    %1175 = vmatprep.subr.mxu0 0.0
    %1176 = vmatpush1.msra.mxu0 0.0
    %1177 = vmatprep.subr.mxu0 0.0
    %1178 = vmatpush1.msra.mxu0 0.0
    %1179 = vmatprep.subr.mxu0 0.0
    %1180 = vmatpush1.msra.mxu0 0.0
    %1181 = vmatprep.subr.mxu0 0.0
    %1182 = vmatpush1.msra.mxu0 0.0
    %1183 = vmatprep.mubr.f32.mxu0 0.0
    %1184 = vmatmul.mubr.f32.gmra.mrb[0].mxu0 %v1117
    %v1185 = vpop.f32.mrb[0].mxu0
    %v1186 = vadd.f32 0.0, %v1185
    %v1187 = vpop.f32.mrb[0].mxu0
    %1188 = vdwg.mxu0
    %1190 = vrot.lane.b32.xlu0 %v1108, 32
    %v1191 = vpop.permute.xlu0 %1190
    %v1192 = vsel %vm132, %v1191, 0
    %1194 = vmatprep.subr.mxu0 0.0
    %1195 = vmatpush1.msra.mxu0 %v1109
    %1196 = vmatprep.subr.mxu0 0.0
    %1197 = vmatpush1.msra.mxu0 %v1110
    %1198 = vmatprep.subr.mxu0 0.0
    %1199 = vmatpush1.msra.mxu0 %v1111
    %1200 = vmatprep.subr.mxu0 0.0
    %1201 = vmatpush1.msra.mxu0 %v1112
    %1202 = vmatprep.subr.mxu0 0.0
    %1203 = vmatpush1.msra.mxu0 0.0
    %1204 = vmatprep.subr.mxu0 0.0
    %1205 = vmatpush1.msra.mxu0 0.0
    %1206 = vmatprep.subr.mxu0 0.0
    %1207 = vmatpush1.msra.mxu0 0.0
    %1208 = vmatprep.subr.mxu0 0.0
    %1209 = vmatpush1.msra.mxu0 0.0
    %1210 = vmatprep.subr.mxu0 0.0
    %1211 = vmatpush1.msra.mxu0 0.0
    %1212 = vmatprep.subr.mxu0 0.0
    %1213 = vmatpush1.msra.mxu0 0.0
    %1214 = vmatprep.subr.mxu0 0.0
    %1215 = vmatpush1.msra.mxu0 0.0
    %1216 = vmatprep.subr.mxu0 0.0
    %1217 = vmatpush1.msra.mxu0 0.0
    %1218 = vmatprep.subr.mxu0 0.0
    %1219 = vmatpush1.msra.mxu0 0.0
    %1220 = vmatprep.subr.mxu0 0.0
    %1221 = vmatpush1.msra.mxu0 0.0
    %1222 = vmatprep.subr.mxu0 0.0
    %1223 = vmatpush1.msra.mxu0 0.0
    %1224 = vmatprep.subr.mxu0 0.0
    %1225 = vmatpush1.msra.mxu0 0.0
    %1226 = vmatprep.subr.mxu0 0.0
    %1227 = vmatpush1.msra.mxu0 0.0
    %1228 = vmatprep.subr.mxu0 0.0
    %1229 = vmatpush1.msra.mxu0 0.0
    %1230 = vmatprep.subr.mxu0 0.0
    %1231 = vmatpush1.msra.mxu0 0.0
    %1232 = vmatprep.subr.mxu0 0.0
    %1233 = vmatpush1.msra.mxu0 0.0
    %1234 = vmatprep.subr.mxu0 0.0
    %1235 = vmatpush1.msra.mxu0 0.0
    %1236 = vmatprep.subr.mxu0 0.0
    %1237 = vmatpush1.msra.mxu0 0.0
    %1238 = vmatprep.subr.mxu0 0.0
    %1239 = vmatpush1.msra.mxu0 0.0
    %1240 = vmatprep.subr.mxu0 0.0
    %1241 = vmatpush1.msra.mxu0 0.0
    %1242 = vmatprep.subr.mxu0 0.0
    %1243 = vmatpush1.msra.mxu0 0.0
    %1244 = vmatprep.subr.mxu0 0.0
    %1245 = vmatpush1.msra.mxu0 0.0
    %1246 = vmatprep.subr.mxu0 0.0
    %1247 = vmatpush1.msra.mxu0 0.0
    %1248 = vmatprep.subr.mxu0 0.0
    %1249 = vmatpush1.msra.mxu0 0.0
    %1250 = vmatprep.subr.mxu0 0.0
    %1251 = vmatpush1.msra.mxu0 0.0
    %1252 = vmatprep.subr.mxu0 0.0
    %1253 = vmatpush1.msra.mxu0 0.0
    %1254 = vmatprep.subr.mxu0 0.0
    %1255 = vmatpush1.msra.mxu0 0.0
    %1256 = vmatprep.subr.mxu0 0.0
    %1257 = vmatpush1.msra.mxu0 0.0
    %1258 = vmatprep.mubr.f32.mxu0 0.0
    %1259 = vmatmul.mubr.f32.gmra.mrb[0].mxu0 %v1192
    %v1260 = vpop.f32.mrb[0].mxu0
    %v1261 = vadd.f32 %v1186, %v1260
    %v1262 = vpop.f32.mrb[0].mxu0
    %1263 = vdwg.mxu0
    %v1264 = vld [vmem:[%s8] sm:$0x1]
    %v1266 = vlaneseq
    %v1267 = vshrl.u32 %v1266, 7
    %v1268 = vsub.s32 0, %v1267
    %v1269 = vrot.slane %v1264, %v1268
    %v1271 = vadd.f32 %v1261, %v1269
    %v1272 = vtanh.pop %v1271
    %vm1273 = vcmask 123904
    %1274 = vst.msk [vmem:[#allocation2] sm:$0x3] %vm1273, %v1272
    // Predicated region
    $region38: #{text_only_rnn_forward.1} parent=1 // pred_check
      _
    $region39: #{text_only_rnn_forward.1} parent=1 // pred_check_branch
      %1276 = sbr.rel (0) target = $region41
    $region40: #{text_only_rnn_forward.1} parent=1 // pred_region
      %s1278 = ssub.s32 32, 32
      %1279 = vsyncadd [#allocation3], %s1278
      %s1281 = sshll.u32 [#allocation2], 4
      %s1282 = int_to_ptr.vmem [resolvable:$true] %s1281
      %1284 = dma.vmem_to_hbm [thread:$0]  %s1282, 32, %s9, [#allocation3]
    $region41: #{text_only_rnn_forward.1} parent=1 // pred_fallthru
      _
    // Predicated region
    $region42: #{text_only_rnn_forward.1} parent=1 // pred_check
      _
    $region43: #{text_only_rnn_forward.1} parent=1 // pred_check_branch
      %1286 = sbr.rel (0) target = $region45
    $region44: #{text_only_rnn_forward.1} parent=1 // pred_region
      %1287 = dma.done [#allocation3], 32
    $region45: #{text_only_rnn_forward.1} parent=1 // pred_fallthru
      _
    %1288 = vsyncpa [#allocation3], 1

</llo_original>
